<compile_context>
chip_gen: v7x
topology: tpu7x:2x2x1
jax: 0.10.0
libtpu: 0.0.40
codegen_flags: <defaults>
</compile_context>

<pallas_src>
import functools

import jax
import jax.numpy as jnp
from jax.experimental import pallas as pl
from jax.experimental.pallas import tpu as pltpu


def _lstm_model_kernel(x_ref, w_in_ref, b_ref, wh_ref, w1_ref, b1_ref, w2_ref, b2_ref,
                       out_ref, *, batch, seq_len, hidden_size):
    B, S, H = batch, seq_len, hidden_size

    # ---- Phase 1: x-path gates for the whole sequence in ONE matmul ---------------------
    # x_ref is time-major flattened: rows [t*B, (t+1)*B) hold the batch rows of timestep t.
    gates_x = (jnp.dot(x_ref[...], w_in_ref[...], preferred_element_type=jnp.float32)
               + b_ref[...])                                      # (S*B, 4H); bias added once

    # Hoist constant recurrent weight load out of the recurrence.
    wh = wh_ref[...]                                              # (H, 4H)

    # ---- Phase 2: serial recurrence, fully unrolled (seq_len is compile-time) -----------
    # h/c live in vregs; the only per-step MXU work is h @ Wh.
    h = jnp.zeros((B, H), jnp.float32)
    c = jnp.zeros((B, H), jnp.float32)
    for t in range(S):
        gates = (gates_x[t * B:(t + 1) * B, :]                    # static sublane slice
                 + jnp.dot(h, wh, preferred_element_type=jnp.float32))   # (B, 4H)
        # Gate order matches torch.chunk(4, dim=1): i, f, g, o.
        # (At production H — a multiple of 128 — these lane slices are tile-aligned.)
        i_g = jax.nn.sigmoid(gates[:, 0 * H:1 * H])
        f_g = jax.nn.sigmoid(gates[:, 1 * H:2 * H])
        g_g = jnp.tanh(gates[:, 2 * H:3 * H])
        o_g = jax.nn.sigmoid(gates[:, 3 * H:4 * H])
        c = f_g * c + i_g * g_g
        h = o_g * jnp.tanh(c)

    # ---- fc head on the final hidden state: Linear(H,32) -> ReLU -> Linear(32,1) --------
    z = jnp.maximum(jnp.dot(h, w1_ref[...], preferred_element_type=jnp.float32)
                    + b1_ref[...], 0.0)
    out_ref[...] = (jnp.dot(z, w2_ref[...], preferred_element_type=jnp.float32)
                    + b2_ref[...])


def lstm_model_forward(x, params, hidden_size):
    """x: (batch, seq_len, input_size) float32 -> (batch, 1) float32."""
    batch, seq_len, input_size = x.shape
    H = hidden_size
    (wp_t, bp, wx_t, bx, wh_t, bh, w1_t, b1, w2_t, b2) = params

    # Fold input_projection into x2h and collapse all x-path/gate biases into one vector:
    #   (x @ Wp_t + bp) @ Wx_t + bx + bh  =  x @ (Wp_t @ Wx_t) + (bp @ Wx_t + bx + bh)
    w_in = wp_t @ wx_t                      # (D, 4H)
    b_fused = bp @ wx_t + bx + bh           # (1, 4H)

    # Time-major, flattened so the x-path is a single tall matmul inside the kernel.
    x_flat = jnp.transpose(x, (1, 0, 2)).reshape(seq_len * batch, input_size)

    kernel = functools.partial(_lstm_model_kernel,
                               batch=batch, seq_len=seq_len, hidden_size=H)
    vmem = pl.BlockSpec(memory_space=pltpu.MemorySpace.VMEM)

    out = pl.pallas_call(
        kernel,
        out_shape=jax.ShapeDtypeStruct((batch, 1), jnp.float32),
        in_specs=[vmem] * 8,
        out_specs=vmem,
        compiler_params=pltpu.CompilerParams(vmem_limit_bytes=64 << 20),
    )(x_flat, w_in, b_fused, wh_t, w1_t, b1, w2_t, b2)
    return out


def init_params(key, input_size, hidden_size):
    """Deterministic init. Weights stored pre-transposed (in, out); biases as (1, out)."""
    ks = jax.random.split(key, 10)
    D, H = input_size, hidden_size

    def lin(kw, kb, n_in, n_out):
        bound = 1.0 / jnp.sqrt(n_in)
        w = jax.random.uniform(kw, (n_in, n_out), jnp.float32, -bound, bound)  # (in, out)
        b = jax.random.uniform(kb, (1, n_out), jnp.float32, -bound, bound)
        return w, b

    wp_t, bp = lin(ks[0], ks[1], D, D)          # input_projection: Linear(D, D)
    wx_t, bx = lin(ks[2], ks[3], D, 4 * H)      # x2h: Linear(D, 4H)
    wh_t, bh = lin(ks[4], ks[5], H, 4 * H)      # h2h: Linear(H, 4H)
    w1_t, b1 = lin(ks[6], ks[7], H, 32)         # fc Linear(H, 32)
    w2_t, b2 = lin(ks[8], ks[9], 32, 1)         # fc Linear(32, 1)
    return (wp_t, bp, wx_t, bx, wh_t, bh, w1_t, b1, w2_t, b2)


def reference_forward(x, params, hidden_size):
    """Pure-JAX reference matching the PyTorch module semantics (unfused)."""
    (wp_t, bp, wx_t, bx, wh_t, bh, w1_t, b1, w2_t, b2) = params
    B, S, D = x.shape
    H = hidden_size
    xp = x @ wp_t + bp
    h = jnp.zeros((B, H), jnp.float32)
    c = jnp.zeros((B, H), jnp.float32)
    for t in range(S):
        x_t = xp[:, t, :]
        gates = x_t @ wx_t + bx + h @ wh_t + bh
        i_g = jax.nn.sigmoid(gates[:, 0 * H:1 * H])
        f_g = jax.nn.sigmoid(gates[:, 1 * H:2 * H])
        g_g = jnp.tanh(gates[:, 2 * H:3 * H])
        o_g = jax.nn.sigmoid(gates[:, 3 * H:4 * H])
        c = f_g * c + i_g * g_g
        h = o_g * jnp.tanh(c)
    z = jnp.maximum(h @ w1_t + b1, 0.0)
    return z @ w2_t + b2


if __name__ == "__main__":
    batch, seq_len, input_size, hidden_size = 2, 8, 16, 32

    key = jax.random.PRNGKey(0)
    k_x, k_p = jax.random.split(key)
    x = jax.random.normal(k_x, (batch, seq_len, input_size), jnp.float32)
    params = init_params(k_p, input_size, hidden_size)

    out = lstm_model_forward(x, params, hidden_size)
    out = jax.block_until_ready(out)

    ref = reference_forward(x, params, hidden_size)
    assert out.shape == (batch, 1)
    # Weight fusion (Wp@Wx) reassociates the f32 math slightly; tolerance reflects that.
    assert jnp.allclose(out, ref, atol=1e-4, rtol=1e-4), (out, ref)

    print("KERNEL_OK")
</pallas_src>

<mosaic_0001>
module attributes {stable_mosaic.version = 11 : i64} {
  func.func @_lstm_model_kernel(%arg0: memref<16x16xf32, #tpu.memory_space<vmem>>, %arg1: memref<16x128xf32, #tpu.memory_space<vmem>>, %arg2: memref<1x128xf32, #tpu.memory_space<vmem>>, %arg3: memref<32x128xf32, #tpu.memory_space<vmem>>, %arg4: memref<32x32xf32, #tpu.memory_space<vmem>>, %arg5: memref<1x32xf32, #tpu.memory_space<vmem>>, %arg6: memref<32x1xf32, #tpu.memory_space<vmem>>, %arg7: memref<1x1xf32, #tpu.memory_space<vmem>>, %arg8: memref<2x1xf32, #tpu.memory_space<vmem>>) attributes {dimension_semantics = [], scalar_prefetch = 0 : i64, scratch_operands = 0 : i64, tpu.core_type = #tpu.core_type<tc>} {
    %c0 = arith.constant 0 : index
    %c0_0 = arith.constant 0 : index
    %0 = vector.load %arg0[%c0, %c0_0] : memref<16x16xf32, #tpu.memory_space<vmem>>, vector<16x16xf32>
    %c0_1 = arith.constant 0 : index
    %c0_2 = arith.constant 0 : index
    %1 = vector.load %arg1[%c0_1, %c0_2] : memref<16x128xf32, #tpu.memory_space<vmem>>, vector<16x128xf32>
    %cst = arith.constant dense<0.000000e+00> : vector<16x128xf32>
    %2 = tpu.matmul %0, %1, %cst {dimension_numbers = #tpu.dot_dimension_numbers<[1], [0], [0], [1], [0, 0, 1, 1], [], []>} : vector<16x16xf32>, vector<16x128xf32>, vector<16x128xf32> -> vector<16x128xf32>
    %c0_3 = arith.constant 0 : index
    %c0_4 = arith.constant 0 : index
    %3 = vector.load %arg2[%c0_3, %c0_4] : memref<1x128xf32, #tpu.memory_space<vmem>>, vector<1x128xf32>
    %4 = vector.broadcast %3 : vector<1x128xf32> to vector<16x128xf32>
    %5 = arith.addf %2, %4 : vector<16x128xf32>
    %c0_5 = arith.constant 0 : index
    %c0_6 = arith.constant 0 : index
    %6 = vector.load %arg3[%c0_5, %c0_6] : memref<32x128xf32, #tpu.memory_space<vmem>>, vector<32x128xf32>
    %cst_7 = arith.constant 0.000000e+00 : f32
    %7 = vector.broadcast %cst_7 : f32 to vector<2x32xf32>
    %cst_8 = arith.constant 0.000000e+00 : f32
    %8 = vector.broadcast %cst_8 : f32 to vector<2x32xf32>
    %9 = vector.extract_strided_slice %5 {offsets = [0, 0], sizes = [2, 128], strides = [1, 1]} : vector<16x128xf32> to vector<2x128xf32>
    %cst_9 = arith.constant dense<0.000000e+00> : vector<2x128xf32>
    %10 = tpu.matmul %7, %6, %cst_9 {dimension_numbers = #tpu.dot_dimension_numbers<[1], [0], [0], [1], [0, 0, 1, 1], [], []>} : vector<2x32xf32>, vector<32x128xf32>, vector<2x128xf32> -> vector<2x128xf32>
    %11 = arith.addf %9, %10 : vector<2x128xf32>
    %12 = vector.extract_strided_slice %11 {offsets = [0, 0], sizes = [2, 32], strides = [1, 1]} : vector<2x128xf32> to vector<2x32xf32>
    %13 = arith.negf %12 : vector<2x32xf32>
    %14 = math.exp %13 : vector<2x32xf32>
    %cst_10 = arith.constant 1.000000e+00 : f32
    %15 = vector.broadcast %cst_10 : f32 to vector<2x32xf32>
    %16 = arith.addf %15, %14 : vector<2x32xf32>
    %17 = arith.divf %15, %16 : vector<2x32xf32>
    %18 = vector.extract_strided_slice %11 {offsets = [0, 32], sizes = [2, 32], strides = [1, 1]} : vector<2x128xf32> to vector<2x32xf32>
    %19 = arith.negf %18 : vector<2x32xf32>
    %20 = math.exp %19 : vector<2x32xf32>
    %cst_11 = arith.constant 1.000000e+00 : f32
    %21 = vector.broadcast %cst_11 : f32 to vector<2x32xf32>
    %22 = arith.addf %21, %20 : vector<2x32xf32>
    %23 = arith.divf %21, %22 : vector<2x32xf32>
    %24 = vector.extract_strided_slice %11 {offsets = [0, 64], sizes = [2, 32], strides = [1, 1]} : vector<2x128xf32> to vector<2x32xf32>
    %25 = math.tanh %24 : vector<2x32xf32>
    %26 = vector.extract_strided_slice %11 {offsets = [0, 96], sizes = [2, 32], strides = [1, 1]} : vector<2x128xf32> to vector<2x32xf32>
    %27 = arith.negf %26 : vector<2x32xf32>
    %28 = math.exp %27 : vector<2x32xf32>
    %cst_12 = arith.constant 1.000000e+00 : f32
    %29 = vector.broadcast %cst_12 : f32 to vector<2x32xf32>
    %30 = arith.addf %29, %28 : vector<2x32xf32>
    %31 = arith.divf %29, %30 : vector<2x32xf32>
    %32 = arith.mulf %23, %8 : vector<2x32xf32>
    %33 = arith.mulf %17, %25 : vector<2x32xf32>
    %34 = arith.addf %32, %33 : vector<2x32xf32>
    %35 = math.tanh %34 : vector<2x32xf32>
    %36 = arith.mulf %31, %35 : vector<2x32xf32>
    %37 = vector.extract_strided_slice %5 {offsets = [2, 0], sizes = [2, 128], strides = [1, 1]} : vector<16x128xf32> to vector<2x128xf32>
    %cst_13 = arith.constant dense<0.000000e+00> : vector<2x128xf32>
    %38 = tpu.matmul %36, %6, %cst_13 {dimension_numbers = #tpu.dot_dimension_numbers<[1], [0], [0], [1], [0, 0, 1, 1], [], []>} : vector<2x32xf32>, vector<32x128xf32>, vector<2x128xf32> -> vector<2x128xf32>
    %39 = arith.addf %37, %38 : vector<2x128xf32>
    %40 = vector.extract_strided_slice %39 {offsets = [0, 0], sizes = [2, 32], strides = [1, 1]} : vector<2x128xf32> to vector<2x32xf32>
    %41 = arith.negf %40 : vector<2x32xf32>
    %42 = math.exp %41 : vector<2x32xf32>
    %cst_14 = arith.constant 1.000000e+00 : f32
    %43 = vector.broadcast %cst_14 : f32 to vector<2x32xf32>
    %44 = arith.addf %43, %42 : vector<2x32xf32>
    %45 = arith.divf %43, %44 : vector<2x32xf32>
    %46 = vector.extract_strided_slice %39 {offsets = [0, 32], sizes = [2, 32], strides = [1, 1]} : vector<2x128xf32> to vector<2x32xf32>
    %47 = arith.negf %46 : vector<2x32xf32>
    %48 = math.exp %47 : vector<2x32xf32>
    %cst_15 = arith.constant 1.000000e+00 : f32
    %49 = vector.broadcast %cst_15 : f32 to vector<2x32xf32>
    %50 = arith.addf %49, %48 : vector<2x32xf32>
    %51 = arith.divf %49, %50 : vector<2x32xf32>
    %52 = vector.extract_strided_slice %39 {offsets = [0, 64], sizes = [2, 32], strides = [1, 1]} : vector<2x128xf32> to vector<2x32xf32>
    %53 = math.tanh %52 : vector<2x32xf32>
    %54 = vector.extract_strided_slice %39 {offsets = [0, 96], sizes = [2, 32], strides = [1, 1]} : vector<2x128xf32> to vector<2x32xf32>
    %55 = arith.negf %54 : vector<2x32xf32>
    %56 = math.exp %55 : vector<2x32xf32>
    %cst_16 = arith.constant 1.000000e+00 : f32
    %57 = vector.broadcast %cst_16 : f32 to vector<2x32xf32>
    %58 = arith.addf %57, %56 : vector<2x32xf32>
    %59 = arith.divf %57, %58 : vector<2x32xf32>
    %60 = arith.mulf %51, %34 : vector<2x32xf32>
    %61 = arith.mulf %45, %53 : vector<2x32xf32>
    %62 = arith.addf %60, %61 : vector<2x32xf32>
    %63 = math.tanh %62 : vector<2x32xf32>
    %64 = arith.mulf %59, %63 : vector<2x32xf32>
    %65 = vector.extract_strided_slice %5 {offsets = [4, 0], sizes = [2, 128], strides = [1, 1]} : vector<16x128xf32> to vector<2x128xf32>
    %cst_17 = arith.constant dense<0.000000e+00> : vector<2x128xf32>
    %66 = tpu.matmul %64, %6, %cst_17 {dimension_numbers = #tpu.dot_dimension_numbers<[1], [0], [0], [1], [0, 0, 1, 1], [], []>} : vector<2x32xf32>, vector<32x128xf32>, vector<2x128xf32> -> vector<2x128xf32>
    %67 = arith.addf %65, %66 : vector<2x128xf32>
    %68 = vector.extract_strided_slice %67 {offsets = [0, 0], sizes = [2, 32], strides = [1, 1]} : vector<2x128xf32> to vector<2x32xf32>
    %69 = arith.negf %68 : vector<2x32xf32>
    %70 = math.exp %69 : vector<2x32xf32>
    %cst_18 = arith.constant 1.000000e+00 : f32
    %71 = vector.broadcast %cst_18 : f32 to vector<2x32xf32>
    %72 = arith.addf %71, %70 : vector<2x32xf32>
    %73 = arith.divf %71, %72 : vector<2x32xf32>
    %74 = vector.extract_strided_slice %67 {offsets = [0, 32], sizes = [2, 32], strides = [1, 1]} : vector<2x128xf32> to vector<2x32xf32>
    %75 = arith.negf %74 : vector<2x32xf32>
    %76 = math.exp %75 : vector<2x32xf32>
    %cst_19 = arith.constant 1.000000e+00 : f32
    %77 = vector.broadcast %cst_19 : f32 to vector<2x32xf32>
    %78 = arith.addf %77, %76 : vector<2x32xf32>
    %79 = arith.divf %77, %78 : vector<2x32xf32>
    %80 = vector.extract_strided_slice %67 {offsets = [0, 64], sizes = [2, 32], strides = [1, 1]} : vector<2x128xf32> to vector<2x32xf32>
    %81 = math.tanh %80 : vector<2x32xf32>
    %82 = vector.extract_strided_slice %67 {offsets = [0, 96], sizes = [2, 32], strides = [1, 1]} : vector<2x128xf32> to vector<2x32xf32>
    %83 = arith.negf %82 : vector<2x32xf32>
    %84 = math.exp %83 : vector<2x32xf32>
    %cst_20 = arith.constant 1.000000e+00 : f32
    %85 = vector.broadcast %cst_20 : f32 to vector<2x32xf32>
    %86 = arith.addf %85, %84 : vector<2x32xf32>
    %87 = arith.divf %85, %86 : vector<2x32xf32>
    %88 = arith.mulf %79, %62 : vector<2x32xf32>
    %89 = arith.mulf %73, %81 : vector<2x32xf32>
    %90 = arith.addf %88, %89 : vector<2x32xf32>
    %91 = math.tanh %90 : vector<2x32xf32>
    %92 = arith.mulf %87, %91 : vector<2x32xf32>
    %93 = vector.extract_strided_slice %5 {offsets = [6, 0], sizes = [2, 128], strides = [1, 1]} : vector<16x128xf32> to vector<2x128xf32>
    %cst_21 = arith.constant dense<0.000000e+00> : vector<2x128xf32>
    %94 = tpu.matmul %92, %6, %cst_21 {dimension_numbers = #tpu.dot_dimension_numbers<[1], [0], [0], [1], [0, 0, 1, 1], [], []>} : vector<2x32xf32>, vector<32x128xf32>, vector<2x128xf32> -> vector<2x128xf32>
    %95 = arith.addf %93, %94 : vector<2x128xf32>
    %96 = vector.extract_strided_slice %95 {offsets = [0, 0], sizes = [2, 32], strides = [1, 1]} : vector<2x128xf32> to vector<2x32xf32>
    %97 = arith.negf %96 : vector<2x32xf32>
    %98 = math.exp %97 : vector<2x32xf32>
    %cst_22 = arith.constant 1.000000e+00 : f32
    %99 = vector.broadcast %cst_22 : f32 to vector<2x32xf32>
    %100 = arith.addf %99, %98 : vector<2x32xf32>
    %101 = arith.divf %99, %100 : vector<2x32xf32>
    %102 = vector.extract_strided_slice %95 {offsets = [0, 32], sizes = [2, 32], strides = [1, 1]} : vector<2x128xf32> to vector<2x32xf32>
    %103 = arith.negf %102 : vector<2x32xf32>
    %104 = math.exp %103 : vector<2x32xf32>
    %cst_23 = arith.constant 1.000000e+00 : f32
    %105 = vector.broadcast %cst_23 : f32 to vector<2x32xf32>
    %106 = arith.addf %105, %104 : vector<2x32xf32>
    %107 = arith.divf %105, %106 : vector<2x32xf32>
    %108 = vector.extract_strided_slice %95 {offsets = [0, 64], sizes = [2, 32], strides = [1, 1]} : vector<2x128xf32> to vector<2x32xf32>
    %109 = math.tanh %108 : vector<2x32xf32>
    %110 = vector.extract_strided_slice %95 {offsets = [0, 96], sizes = [2, 32], strides = [1, 1]} : vector<2x128xf32> to vector<2x32xf32>
    %111 = arith.negf %110 : vector<2x32xf32>
    %112 = math.exp %111 : vector<2x32xf32>
    %cst_24 = arith.constant 1.000000e+00 : f32
    %113 = vector.broadcast %cst_24 : f32 to vector<2x32xf32>
    %114 = arith.addf %113, %112 : vector<2x32xf32>
    %115 = arith.divf %113, %114 : vector<2x32xf32>
    %116 = arith.mulf %107, %90 : vector<2x32xf32>
    %117 = arith.mulf %101, %109 : vector<2x32xf32>
    %118 = arith.addf %116, %117 : vector<2x32xf32>
    %119 = math.tanh %118 : vector<2x32xf32>
    %120 = arith.mulf %115, %119 : vector<2x32xf32>
    %121 = vector.extract_strided_slice %5 {offsets = [8, 0], sizes = [2, 128], strides = [1, 1]} : vector<16x128xf32> to vector<2x128xf32>
    %cst_25 = arith.constant dense<0.000000e+00> : vector<2x128xf32>
    %122 = tpu.matmul %120, %6, %cst_25 {dimension_numbers = #tpu.dot_dimension_numbers<[1], [0], [0], [1], [0, 0, 1, 1], [], []>} : vector<2x32xf32>, vector<32x128xf32>, vector<2x128xf32> -> vector<2x128xf32>
    %123 = arith.addf %121, %122 : vector<2x128xf32>
    %124 = vector.extract_strided_slice %123 {offsets = [0, 0], sizes = [2, 32], strides = [1, 1]} : vector<2x128xf32> to vector<2x32xf32>
    %125 = arith.negf %124 : vector<2x32xf32>
    %126 = math.exp %125 : vector<2x32xf32>
    %cst_26 = arith.constant 1.000000e+00 : f32
    %127 = vector.broadcast %cst_26 : f32 to vector<2x32xf32>
    %128 = arith.addf %127, %126 : vector<2x32xf32>
    %129 = arith.divf %127, %128 : vector<2x32xf32>
    %130 = vector.extract_strided_slice %123 {offsets = [0, 32], sizes = [2, 32], strides = [1, 1]} : vector<2x128xf32> to vector<2x32xf32>
    %131 = arith.negf %130 : vector<2x32xf32>
    %132 = math.exp %131 : vector<2x32xf32>
    %cst_27 = arith.constant 1.000000e+00 : f32
    %133 = vector.broadcast %cst_27 : f32 to vector<2x32xf32>
    %134 = arith.addf %133, %132 : vector<2x32xf32>
    %135 = arith.divf %133, %134 : vector<2x32xf32>
    %136 = vector.extract_strided_slice %123 {offsets = [0, 64], sizes = [2, 32], strides = [1, 1]} : vector<2x128xf32> to vector<2x32xf32>
    %137 = math.tanh %136 : vector<2x32xf32>
    %138 = vector.extract_strided_slice %123 {offsets = [0, 96], sizes = [2, 32], strides = [1, 1]} : vector<2x128xf32> to vector<2x32xf32>
    %139 = arith.negf %138 : vector<2x32xf32>
    %140 = math.exp %139 : vector<2x32xf32>
    %cst_28 = arith.constant 1.000000e+00 : f32
    %141 = vector.broadcast %cst_28 : f32 to vector<2x32xf32>
    %142 = arith.addf %141, %140 : vector<2x32xf32>
    %143 = arith.divf %141, %142 : vector<2x32xf32>
    %144 = arith.mulf %135, %118 : vector<2x32xf32>
    %145 = arith.mulf %129, %137 : vector<2x32xf32>
    %146 = arith.addf %144, %145 : vector<2x32xf32>
    %147 = math.tanh %146 : vector<2x32xf32>
    %148 = arith.mulf %143, %147 : vector<2x32xf32>
    %149 = vector.extract_strided_slice %5 {offsets = [10, 0], sizes = [2, 128], strides = [1, 1]} : vector<16x128xf32> to vector<2x128xf32>
    %cst_29 = arith.constant dense<0.000000e+00> : vector<2x128xf32>
    %150 = tpu.matmul %148, %6, %cst_29 {dimension_numbers = #tpu.dot_dimension_numbers<[1], [0], [0], [1], [0, 0, 1, 1], [], []>} : vector<2x32xf32>, vector<32x128xf32>, vector<2x128xf32> -> vector<2x128xf32>
    %151 = arith.addf %149, %150 : vector<2x128xf32>
    %152 = vector.extract_strided_slice %151 {offsets = [0, 0], sizes = [2, 32], strides = [1, 1]} : vector<2x128xf32> to vector<2x32xf32>
    %153 = arith.negf %152 : vector<2x32xf32>
    %154 = math.exp %153 : vector<2x32xf32>
    %cst_30 = arith.constant 1.000000e+00 : f32
    %155 = vector.broadcast %cst_30 : f32 to vector<2x32xf32>
    %156 = arith.addf %155, %154 : vector<2x32xf32>
    %157 = arith.divf %155, %156 : vector<2x32xf32>
    %158 = vector.extract_strided_slice %151 {offsets = [0, 32], sizes = [2, 32], strides = [1, 1]} : vector<2x128xf32> to vector<2x32xf32>
    %159 = arith.negf %158 : vector<2x32xf32>
    %160 = math.exp %159 : vector<2x32xf32>
    %cst_31 = arith.constant 1.000000e+00 : f32
    %161 = vector.broadcast %cst_31 : f32 to vector<2x32xf32>
    %162 = arith.addf %161, %160 : vector<2x32xf32>
    %163 = arith.divf %161, %162 : vector<2x32xf32>
    %164 = vector.extract_strided_slice %151 {offsets = [0, 64], sizes = [2, 32], strides = [1, 1]} : vector<2x128xf32> to vector<2x32xf32>
    %165 = math.tanh %164 : vector<2x32xf32>
    %166 = vector.extract_strided_slice %151 {offsets = [0, 96], sizes = [2, 32], strides = [1, 1]} : vector<2x128xf32> to vector<2x32xf32>
    %167 = arith.negf %166 : vector<2x32xf32>
    %168 = math.exp %167 : vector<2x32xf32>
    %cst_32 = arith.constant 1.000000e+00 : f32
    %169 = vector.broadcast %cst_32 : f32 to vector<2x32xf32>
    %170 = arith.addf %169, %168 : vector<2x32xf32>
    %171 = arith.divf %169, %170 : vector<2x32xf32>
    %172 = arith.mulf %163, %146 : vector<2x32xf32>
    %173 = arith.mulf %157, %165 : vector<2x32xf32>
    %174 = arith.addf %172, %173 : vector<2x32xf32>
    %175 = math.tanh %174 : vector<2x32xf32>
    %176 = arith.mulf %171, %175 : vector<2x32xf32>
    %177 = vector.extract_strided_slice %5 {offsets = [12, 0], sizes = [2, 128], strides = [1, 1]} : vector<16x128xf32> to vector<2x128xf32>
    %cst_33 = arith.constant dense<0.000000e+00> : vector<2x128xf32>
    %178 = tpu.matmul %176, %6, %cst_33 {dimension_numbers = #tpu.dot_dimension_numbers<[1], [0], [0], [1], [0, 0, 1, 1], [], []>} : vector<2x32xf32>, vector<32x128xf32>, vector<2x128xf32> -> vector<2x128xf32>
    %179 = arith.addf %177, %178 : vector<2x128xf32>
    %180 = vector.extract_strided_slice %179 {offsets = [0, 0], sizes = [2, 32], strides = [1, 1]} : vector<2x128xf32> to vector<2x32xf32>
    %181 = arith.negf %180 : vector<2x32xf32>
    %182 = math.exp %181 : vector<2x32xf32>
    %cst_34 = arith.constant 1.000000e+00 : f32
    %183 = vector.broadcast %cst_34 : f32 to vector<2x32xf32>
    %184 = arith.addf %183, %182 : vector<2x32xf32>
    %185 = arith.divf %183, %184 : vector<2x32xf32>
    %186 = vector.extract_strided_slice %179 {offsets = [0, 32], sizes = [2, 32], strides = [1, 1]} : vector<2x128xf32> to vector<2x32xf32>
    %187 = arith.negf %186 : vector<2x32xf32>
    %188 = math.exp %187 : vector<2x32xf32>
    %cst_35 = arith.constant 1.000000e+00 : f32
    %189 = vector.broadcast %cst_35 : f32 to vector<2x32xf32>
    %190 = arith.addf %189, %188 : vector<2x32xf32>
    %191 = arith.divf %189, %190 : vector<2x32xf32>
    %192 = vector.extract_strided_slice %179 {offsets = [0, 64], sizes = [2, 32], strides = [1, 1]} : vector<2x128xf32> to vector<2x32xf32>
    %193 = math.tanh %192 : vector<2x32xf32>
    %194 = vector.extract_strided_slice %179 {offsets = [0, 96], sizes = [2, 32], strides = [1, 1]} : vector<2x128xf32> to vector<2x32xf32>
    %195 = arith.negf %194 : vector<2x32xf32>
    %196 = math.exp %195 : vector<2x32xf32>
    %cst_36 = arith.constant 1.000000e+00 : f32
    %197 = vector.broadcast %cst_36 : f32 to vector<2x32xf32>
    %198 = arith.addf %197, %196 : vector<2x32xf32>
    %199 = arith.divf %197, %198 : vector<2x32xf32>
    %200 = arith.mulf %191, %174 : vector<2x32xf32>
    %201 = arith.mulf %185, %193 : vector<2x32xf32>
    %202 = arith.addf %200, %201 : vector<2x32xf32>
    %203 = math.tanh %202 : vector<2x32xf32>
    %204 = arith.mulf %199, %203 : vector<2x32xf32>
    %205 = vector.extract_strided_slice %5 {offsets = [14, 0], sizes = [2, 128], strides = [1, 1]} : vector<16x128xf32> to vector<2x128xf32>
    %cst_37 = arith.constant dense<0.000000e+00> : vector<2x128xf32>
    %206 = tpu.matmul %204, %6, %cst_37 {dimension_numbers = #tpu.dot_dimension_numbers<[1], [0], [0], [1], [0, 0, 1, 1], [], []>} : vector<2x32xf32>, vector<32x128xf32>, vector<2x128xf32> -> vector<2x128xf32>
    %207 = arith.addf %205, %206 : vector<2x128xf32>
    %208 = vector.extract_strided_slice %207 {offsets = [0, 0], sizes = [2, 32], strides = [1, 1]} : vector<2x128xf32> to vector<2x32xf32>
    %209 = arith.negf %208 : vector<2x32xf32>
    %210 = math.exp %209 : vector<2x32xf32>
    %cst_38 = arith.constant 1.000000e+00 : f32
    %211 = vector.broadcast %cst_38 : f32 to vector<2x32xf32>
    %212 = arith.addf %211, %210 : vector<2x32xf32>
    %213 = arith.divf %211, %212 : vector<2x32xf32>
    %214 = vector.extract_strided_slice %207 {offsets = [0, 32], sizes = [2, 32], strides = [1, 1]} : vector<2x128xf32> to vector<2x32xf32>
    %215 = arith.negf %214 : vector<2x32xf32>
    %216 = math.exp %215 : vector<2x32xf32>
    %cst_39 = arith.constant 1.000000e+00 : f32
    %217 = vector.broadcast %cst_39 : f32 to vector<2x32xf32>
    %218 = arith.addf %217, %216 : vector<2x32xf32>
    %219 = arith.divf %217, %218 : vector<2x32xf32>
    %220 = vector.extract_strided_slice %207 {offsets = [0, 64], sizes = [2, 32], strides = [1, 1]} : vector<2x128xf32> to vector<2x32xf32>
    %221 = math.tanh %220 : vector<2x32xf32>
    %222 = vector.extract_strided_slice %207 {offsets = [0, 96], sizes = [2, 32], strides = [1, 1]} : vector<2x128xf32> to vector<2x32xf32>
    %223 = arith.negf %222 : vector<2x32xf32>
    %224 = math.exp %223 : vector<2x32xf32>
    %cst_40 = arith.constant 1.000000e+00 : f32
    %225 = vector.broadcast %cst_40 : f32 to vector<2x32xf32>
    %226 = arith.addf %225, %224 : vector<2x32xf32>
    %227 = arith.divf %225, %226 : vector<2x32xf32>
    %228 = arith.mulf %219, %202 : vector<2x32xf32>
    %229 = arith.mulf %213, %221 : vector<2x32xf32>
    %230 = arith.addf %228, %229 : vector<2x32xf32>
    %231 = math.tanh %230 : vector<2x32xf32>
    %232 = arith.mulf %227, %231 : vector<2x32xf32>
    %c0_41 = arith.constant 0 : index
    %c0_42 = arith.constant 0 : index
    %233 = vector.load %arg4[%c0_41, %c0_42] : memref<32x32xf32, #tpu.memory_space<vmem>>, vector<32x32xf32>
    %cst_43 = arith.constant dense<0.000000e+00> : vector<2x32xf32>
    %234 = tpu.matmul %232, %233, %cst_43 {dimension_numbers = #tpu.dot_dimension_numbers<[1], [0], [0], [1], [0, 0, 1, 1], [], []>} : vector<2x32xf32>, vector<32x32xf32>, vector<2x32xf32> -> vector<2x32xf32>
    %c0_44 = arith.constant 0 : index
    %c0_45 = arith.constant 0 : index
    %235 = vector.load %arg5[%c0_44, %c0_45] : memref<1x32xf32, #tpu.memory_space<vmem>>, vector<1x32xf32>
    %236 = vector.broadcast %235 : vector<1x32xf32> to vector<2x32xf32>
    %237 = arith.addf %234, %236 : vector<2x32xf32>
    %cst_46 = arith.constant 0.000000e+00 : f32
    %238 = vector.broadcast %cst_46 : f32 to vector<2x32xf32>
    %239 = arith.maximumf %237, %238 : vector<2x32xf32>
    %c0_47 = arith.constant 0 : index
    %c0_48 = arith.constant 0 : index
    %240 = vector.load %arg6[%c0_47, %c0_48] : memref<32x1xf32, #tpu.memory_space<vmem>>, vector<32x1xf32>
    %cst_49 = arith.constant dense<0.000000e+00> : vector<2x1xf32>
    %241 = tpu.matmul %239, %240, %cst_49 {dimension_numbers = #tpu.dot_dimension_numbers<[1], [0], [0], [1], [0, 0, 1, 1], [], []>} : vector<2x32xf32>, vector<32x1xf32>, vector<2x1xf32> -> vector<2x1xf32>
    %c0_50 = arith.constant 0 : index
    %c0_51 = arith.constant 0 : index
    %242 = vector.load %arg7[%c0_50, %c0_51] : memref<1x1xf32, #tpu.memory_space<vmem>>, vector<1x1xf32>
    %243 = vector.broadcast %242 : vector<1x1xf32> to vector<2x1xf32>
    %244 = arith.addf %241, %243 : vector<2x1xf32>
    %c0_52 = arith.constant 0 : index
    %c0_53 = arith.constant 0 : index
    %245 = vector.load %arg8[%c0_52, %c0_53] : memref<2x1xf32, #tpu.memory_space<vmem>>, vector<2x1xf32>
    tpu.vector_store %arg8[%c0_52, %c0_53], %244 {strides = array<i32>} : memref<2x1xf32, #tpu.memory_space<vmem>>, vector<2x1xf32>,
    return
  }
}

</mosaic_0001>

<llo_original>
// kernel: tpu_custom_call.1
$region0: #{tpu_custom_call.1}
  #allocation0 [shape = 'u32[]', space=smem, size = 0x4, offset = 0x4, fixed_abs, tag = 'smem constant byte address 0x4 - core index']
  #allocation1 [shape = 'u32[144,128]{1,0:T(1,128)}', space=vmem, size = 0x12000, scoped, tag = 'internal scratch']
  #allocation2 [shape = 'f32[1,1]{1,0:T(1,128)S(1)}', space=vmem, size = 0x200, scoped, tag = 'scoped memory for tpu_custom_call.1']
  %s0 = inlined_call_operand.hbm [shape: f32[16,16], index: 0, kind: input, shape index: {}]
  %s1 = inlined_call_operand.hbm [shape: f32[16,128], index: 1, kind: input, shape index: {}]
  %s2 = inlined_call_operand.hbm [shape: f32[1,128], index: 2, kind: input, shape index: {}]
  %s3 = inlined_call_operand.hbm [shape: f32[32,128], index: 3, kind: input, shape index: {}]
  %s4 = inlined_call_operand.hbm [shape: f32[32,32], index: 4, kind: input, shape index: {}]
  %s5 = inlined_call_operand.hbm [shape: f32[1,32], index: 5, kind: input, shape index: {}]
  %s6 = inlined_call_operand.hbm [shape: f32[32,1], index: 6, kind: input, shape index: {}]
  %s7 = inlined_call_operand.<no memory space> [shape: f32[1,1], index: 7, kind: input, shape index: {}]
  %s8 = inlined_call_operand.hbm [shape: f32[2,1], index: 8, kind: output, shape index: {}]
  %s9 = sld [smem:[#allocation0]]
  $region70: #{tpu_custom_call.1} parent=0
    _
  %s11 = ssub.s32 1, %s9
  %s12 = scalar_select 0, %s11, %s9
  %v13 = vstv %s7
  %14 = vst [vmem:[#allocation2] sm:$0x1] %v13
  $region1: #{tpu_custom_call.1} parent=0
    #allocation3 [shape = 'u8[8192]{0}', space=vmem, size = 0x2000, scoped, tag = 'input window, operand 0, single buffered']
    #allocation4 [shape = 's32[1]{0}', space=sflag, size = 0x4, scoped, tag = 'scoped memory for tpu_custom_call.1']
    #allocation5 [shape = 's32[1]{0}', space=sflag, size = 0x4, scoped, tag = 'scoped memory for tpu_custom_call.1']
    #allocation6 [shape = 'u8[8192]{0}', space=vmem, size = 0x2000, scoped, tag = 'input window, operand 1, single buffered']
    #allocation7 [shape = 's32[1]{0}', space=sflag, size = 0x4, scoped, tag = 'scoped memory for tpu_custom_call.1']
    #allocation8 [shape = 'u8[512]{0}', space=vmem, size = 0x400, scoped, tag = 'input window, operand 2, single buffered']
    #allocation9 [shape = 'u8[16384]{0}', space=vmem, size = 0x4000, scoped, tag = 'input window, operand 3, single buffered']
    #allocation10 [shape = 's32[1]{0}', space=sflag, size = 0x4, scoped, tag = 'scoped memory for tpu_custom_call.1']
    #allocation11 [shape = 'u8[16384]{0}', space=vmem, size = 0x4000, scoped, tag = 'input window, operand 4, single buffered']
    #allocation12 [shape = 'u8[512]{0}', space=vmem, size = 0x400, scoped, tag = 'input window, operand 5, single buffered']
    #allocation13 [shape = 's32[1]{0}', space=sflag, size = 0x4, scoped, tag = 'scoped memory for tpu_custom_call.1']
    #allocation14 [shape = 'u8[16384]{0}', space=vmem, size = 0x4000, scoped, tag = 'input window, operand 6, single buffered']
    #allocation15 [shape = 'u8[1024]{0}', space=vmem, size = 0x400, scoped, tag = 'output window, operand 0, single buffered']
    %15 = vsyncpa [#allocation4], 0
    %16 = vsyncpa [#allocation7], 0
    %17 = vsyncpa [#allocation10], 0
    %18 = vsyncpa [#allocation13], 0
    %19 = vsyncpa [#allocation5], 0
    // Predicated region
    $region2: #{tpu_custom_call.1} parent=1 // pred_check
      _
    $region3: #{tpu_custom_call.1} parent=1 // pred_check_branch
      %21 = sbr.rel (0) target = $region5
    $region4: #{tpu_custom_call.1} parent=1 // pred_region
      %s23 = ssub.s32 256, 256
      %24 = vsyncadd [#allocation4], %s23
      %s25 = sshll.u32 [#allocation3], 4
      %s26 = int_to_ptr.vmem [resolvable:$true] %s25
      %31 = dma.hbm_to_vmem [thread:$0]  %s0, 256, %s26, [#allocation4], 128, 128, 8
    $region5: #{tpu_custom_call.1} parent=1 // pred_fallthru
      _
    // Predicated region
    $region6: #{tpu_custom_call.1} parent=1 // pred_check
      _
    $region7: #{tpu_custom_call.1} parent=1 // pred_check_branch
      %33 = sbr.rel (0) target = $region9
    $region8: #{tpu_custom_call.1} parent=1 // pred_region
      %s35 = ssub.s32 256, 256
      %36 = vsyncadd [#allocation7], %s35
      %s37 = sshll.u32 [#allocation6], 4
      %s38 = int_to_ptr.vmem [resolvable:$true] %s37
      %43 = dma.hbm_to_vmem [thread:$0]  %s1, 256, %s38, [#allocation7], 128, 128, 8
    $region9: #{tpu_custom_call.1} parent=1 // pred_fallthru
      _
    // Predicated region
    $region10: #{tpu_custom_call.1} parent=1 // pred_check
      _
    $region11: #{tpu_custom_call.1} parent=1 // pred_check_branch
      %45 = sbr.rel (0) target = $region13
    $region12: #{tpu_custom_call.1} parent=1 // pred_region
      %s47 = ssub.s32 16, 16
      %48 = vsyncadd [#allocation7], %s47
      %s50 = sshll.u32 [#allocation8], 4
      %s51 = int_to_ptr.vmem [resolvable:$true] %s50
      %53 = dma.hbm_to_vmem [thread:$0]  %s2, 16, %s51, [#allocation7]
    $region13: #{tpu_custom_call.1} parent=1 // pred_fallthru
      _
    // Predicated region
    $region14: #{tpu_custom_call.1} parent=1 // pred_check
      _
    $region15: #{tpu_custom_call.1} parent=1 // pred_check_branch
      %55 = sbr.rel (0) target = $region17
    $region16: #{tpu_custom_call.1} parent=1 // pred_region
      %s57 = ssub.s32 512, 512
      %58 = vsyncadd [#allocation10], %s57
      %s59 = sshll.u32 [#allocation9], 4
      %s60 = int_to_ptr.vmem [resolvable:$true] %s59
      %65 = dma.hbm_to_vmem [thread:$0]  %s3, 512, %s60, [#allocation10], 128, 128, 8
    $region17: #{tpu_custom_call.1} parent=1 // pred_fallthru
      _
    // Predicated region
    $region18: #{tpu_custom_call.1} parent=1 // pred_check
      _
    $region19: #{tpu_custom_call.1} parent=1 // pred_check_branch
      %67 = sbr.rel (0) target = $region21
    $region20: #{tpu_custom_call.1} parent=1 // pred_region
      %s69 = ssub.s32 512, 512
      %70 = vsyncadd [#allocation10], %s69
      %s71 = sshll.u32 [#allocation11], 4
      %s72 = int_to_ptr.vmem [resolvable:$true] %s71
      %77 = dma.hbm_to_vmem [thread:$0]  %s4, 512, %s72, [#allocation10], 128, 128, 8
    $region21: #{tpu_custom_call.1} parent=1 // pred_fallthru
      _
    // Predicated region
    $region22: #{tpu_custom_call.1} parent=1 // pred_check
      _
    $region23: #{tpu_custom_call.1} parent=1 // pred_check_branch
      %79 = sbr.rel (0) target = $region25
    $region24: #{tpu_custom_call.1} parent=1 // pred_region
      %s81 = ssub.s32 16, 16
      %82 = vsyncadd [#allocation13], %s81
      %s84 = sshll.u32 [#allocation12], 4
      %s85 = int_to_ptr.vmem [resolvable:$true] %s84
      %87 = dma.hbm_to_vmem [thread:$0]  %s5, 16, %s85, [#allocation13]
    $region25: #{tpu_custom_call.1} parent=1 // pred_fallthru
      _
    // Predicated region
    $region26: #{tpu_custom_call.1} parent=1 // pred_check
      _
    $region27: #{tpu_custom_call.1} parent=1 // pred_check_branch
      %89 = sbr.rel (0) target = $region29
    $region28: #{tpu_custom_call.1} parent=1 // pred_region
      %s91 = ssub.s32 512, 512
      %92 = vsyncadd [#allocation13], %s91
      %s93 = sshll.u32 [#allocation14], 4
      %s94 = int_to_ptr.vmem [resolvable:$true] %s93
      %99 = dma.hbm_to_vmem [thread:$0]  %s6, 512, %s94, [#allocation13], 128, 128, 8
    $region29: #{tpu_custom_call.1} parent=1 // pred_fallthru
      _
    // Predicated region
    $region30: #{tpu_custom_call.1} parent=1 // pred_check
      _
    $region31: #{tpu_custom_call.1} parent=1 // pred_check_branch
      %101 = sbr.rel (0) target = $region33
    $region32: #{tpu_custom_call.1} parent=1 // pred_region
      _
    $region33: #{tpu_custom_call.1} parent=1 // pred_fallthru
      _
    // Predicated region
    $region34: #{tpu_custom_call.1} parent=1 // pred_check
      _
    $region35: #{tpu_custom_call.1} parent=1 // pred_check_branch
      %103 = sbr.rel (0) target = $region37
    $region36: #{tpu_custom_call.1} parent=1 // pred_region
      %104 = dma.done [#allocation4], 256
    $region37: #{tpu_custom_call.1} parent=1 // pred_fallthru
      _
    // Predicated region
    $region38: #{tpu_custom_call.1} parent=1 // pred_check
      _
    $region39: #{tpu_custom_call.1} parent=1 // pred_check_branch
      %106 = sbr.rel (0) target = $region41
    $region40: #{tpu_custom_call.1} parent=1 // pred_region
      %107 = dma.done [#allocation7], 256
    $region41: #{tpu_custom_call.1} parent=1 // pred_fallthru
      _
    // Predicated region
    $region42: #{tpu_custom_call.1} parent=1 // pred_check
      _
    $region43: #{tpu_custom_call.1} parent=1 // pred_check_branch
      %109 = sbr.rel (0) target = $region45
    $region44: #{tpu_custom_call.1} parent=1 // pred_region
      %110 = dma.done [#allocation7], 16
    $region45: #{tpu_custom_call.1} parent=1 // pred_fallthru
      _
    // Predicated region
    $region46: #{tpu_custom_call.1} parent=1 // pred_check
      _
    $region47: #{tpu_custom_call.1} parent=1 // pred_check_branch
      %112 = sbr.rel (0) target = $region49
    $region48: #{tpu_custom_call.1} parent=1 // pred_region
      %113 = dma.done [#allocation10], 512
    $region49: #{tpu_custom_call.1} parent=1 // pred_fallthru
      _
    // Predicated region
    $region50: #{tpu_custom_call.1} parent=1 // pred_check
      _
    $region51: #{tpu_custom_call.1} parent=1 // pred_check_branch
      %115 = sbr.rel (0) target = $region53
    $region52: #{tpu_custom_call.1} parent=1 // pred_region
      %116 = dma.done [#allocation10], 512
    $region53: #{tpu_custom_call.1} parent=1 // pred_fallthru
      _
    // Predicated region
    $region54: #{tpu_custom_call.1} parent=1 // pred_check
      _
    $region55: #{tpu_custom_call.1} parent=1 // pred_check_branch
      %118 = sbr.rel (0) target = $region57
    $region56: #{tpu_custom_call.1} parent=1 // pred_region
      %119 = dma.done [#allocation13], 16
    $region57: #{tpu_custom_call.1} parent=1 // pred_fallthru
      _
    // Predicated region
    $region58: #{tpu_custom_call.1} parent=1 // pred_check
      _
    $region59: #{tpu_custom_call.1} parent=1 // pred_check_branch
      %121 = sbr.rel (0) target = $region61
    $region60: #{tpu_custom_call.1} parent=1 // pred_region
      %122 = dma.done [#allocation13], 512
    $region61: #{tpu_custom_call.1} parent=1 // pred_fallthru
      _
    %v123 = vld [vmem:[#allocation3] sm:$0xff]
    %v124 = vld [vmem:[#allocation3 + $0x8] sm:$0xff]
    %v125 = vld [vmem:[#allocation6] sm:$0xff]
    %v126 = vld [vmem:[#allocation6 + $0x8] sm:$0xff]
    %v127 = vld [vmem:[#allocation8] sm:$0x1]
    %v129 = vlaneseq
    %v130 = vshrl.u32 %v129, 7
    %v131 = vsub.s32 0, %v130
    %v132 = vrot.slane %v127, %v131
    %vm134 = vcmask 130048
    %v136 = vsel %vm134, %v123, 0
    %v139 = vsel %vm134, %v124, 0
    %141 = vmatprep.subr.mxu0 0.0
    %142 = vmatpush1.msra.mxu0 %v125
    %143 = vmatprep.subr.mxu0 0.0
    %144 = vmatpush1.msra.mxu0 %v126
    %145 = vmatprep.subr.mxu0 0.0
    %146 = vmatpush1.msra.mxu0 0.0
    %147 = vmatprep.subr.mxu0 0.0
    %148 = vmatpush1.msra.mxu0 0.0
    %149 = vmatprep.subr.mxu0 0.0
    %150 = vmatpush1.msra.mxu0 0.0
    %151 = vmatprep.subr.mxu0 0.0
    %152 = vmatpush1.msra.mxu0 0.0
    %153 = vmatprep.subr.mxu0 0.0
    %154 = vmatpush1.msra.mxu0 0.0
    %155 = vmatprep.subr.mxu0 0.0
    %156 = vmatpush1.msra.mxu0 0.0
    %157 = vmatprep.subr.mxu0 0.0
    %158 = vmatpush1.msra.mxu0 0.0
    %159 = vmatprep.subr.mxu0 0.0
    %160 = vmatpush1.msra.mxu0 0.0
    %161 = vmatprep.subr.mxu0 0.0
    %162 = vmatpush1.msra.mxu0 0.0
    %163 = vmatprep.subr.mxu0 0.0
    %164 = vmatpush1.msra.mxu0 0.0
    %165 = vmatprep.subr.mxu0 0.0
    %166 = vmatpush1.msra.mxu0 0.0
    %167 = vmatprep.subr.mxu0 0.0
    %168 = vmatpush1.msra.mxu0 0.0
    %169 = vmatprep.subr.mxu0 0.0
    %170 = vmatpush1.msra.mxu0 0.0
    %171 = vmatprep.subr.mxu0 0.0
    %172 = vmatpush1.msra.mxu0 0.0
    %173 = vmatprep.subr.mxu0 0.0
    %174 = vmatpush1.msra.mxu0 0.0
    %175 = vmatprep.subr.mxu0 0.0
    %176 = vmatpush1.msra.mxu0 0.0
    %177 = vmatprep.subr.mxu0 0.0
    %178 = vmatpush1.msra.mxu0 0.0
    %179 = vmatprep.subr.mxu0 0.0
    %180 = vmatpush1.msra.mxu0 0.0
    %181 = vmatprep.subr.mxu0 0.0
    %182 = vmatpush1.msra.mxu0 0.0
    %183 = vmatprep.subr.mxu0 0.0
    %184 = vmatpush1.msra.mxu0 0.0
    %185 = vmatprep.subr.mxu0 0.0
    %186 = vmatpush1.msra.mxu0 0.0
    %187 = vmatprep.subr.mxu0 0.0
    %188 = vmatpush1.msra.mxu0 0.0
    %189 = vmatprep.subr.mxu0 0.0
    %190 = vmatpush1.msra.mxu0 0.0
    %191 = vmatprep.subr.mxu0 0.0
    %192 = vmatpush1.msra.mxu0 0.0
    %193 = vmatprep.subr.mxu0 0.0
    %194 = vmatpush1.msra.mxu0 0.0
    %195 = vmatprep.subr.mxu0 0.0
    %196 = vmatpush1.msra.mxu0 0.0
    %197 = vmatprep.subr.mxu0 0.0
    %198 = vmatpush1.msra.mxu0 0.0
    %199 = vmatprep.subr.mxu0 0.0
    %200 = vmatpush1.msra.mxu0 0.0
    %201 = vmatprep.subr.mxu0 0.0
    %202 = vmatpush1.msra.mxu0 0.0
    %203 = vmatprep.subr.mxu0 0.0
    %204 = vmatpush1.msra.mxu0 0.0
    %205 = vmatprep.mubr.f32.mxu0 0.0
    %206 = vmatmul.mubr.f32.gmra.mrb[0].mxu0 %v136
    %v207 = vpop.f32.mrb[0].mxu0
    %v208 = vadd.f32 %v132, %v207
    %v209 = vpop.f32.mrb[0].mxu0
    %210 = vmatprep.mubr.f32.mxu0 0.0
    %211 = vmatmul.mubr.f32.gmra.mrb[0].mxu0 %v139
    %v212 = vpop.f32.mrb[0].mxu0
    %v213 = vadd.f32 %v132, %v212
    %v214 = vpop.f32.mrb[0].mxu0
    %215 = vdwg.mxu0
    %v216 = vld [vmem:[#allocation9] sm:$0xff]
    %v217 = vld [vmem:[#allocation9 + $0x8] sm:$0xff]
    %v218 = vld [vmem:[#allocation9 + $0x10] sm:$0xff]
    %v219 = vld [vmem:[#allocation9 + $0x18] sm:$0xff]
    %vm220 = vcmask 261120
    %v222 = vsel %vm220, 0.0, 0
    %224 = vmatprep.subr.mxu0 0.0
    %225 = vmatpush1.msra.mxu0 %v216
    %226 = vmatprep.subr.mxu0 0.0
    %227 = vmatpush1.msra.mxu0 %v217
    %228 = vmatprep.subr.mxu0 0.0
    %229 = vmatpush1.msra.mxu0 %v218
    %230 = vmatprep.subr.mxu0 0.0
    %231 = vmatpush1.msra.mxu0 %v219
    %232 = vmatprep.subr.mxu0 0.0
    %233 = vmatpush1.msra.mxu0 0.0
    %234 = vmatprep.subr.mxu0 0.0
    %235 = vmatpush1.msra.mxu0 0.0
    %236 = vmatprep.subr.mxu0 0.0
    %237 = vmatpush1.msra.mxu0 0.0
    %238 = vmatprep.subr.mxu0 0.0
    %239 = vmatpush1.msra.mxu0 0.0
    %240 = vmatprep.subr.mxu0 0.0
    %241 = vmatpush1.msra.mxu0 0.0
    %242 = vmatprep.subr.mxu0 0.0
    %243 = vmatpush1.msra.mxu0 0.0
    %244 = vmatprep.subr.mxu0 0.0
    %245 = vmatpush1.msra.mxu0 0.0
    %246 = vmatprep.subr.mxu0 0.0
    %247 = vmatpush1.msra.mxu0 0.0
    %248 = vmatprep.subr.mxu0 0.0
    %249 = vmatpush1.msra.mxu0 0.0
    %250 = vmatprep.subr.mxu0 0.0
    %251 = vmatpush1.msra.mxu0 0.0
    %252 = vmatprep.subr.mxu0 0.0
    %253 = vmatpush1.msra.mxu0 0.0
    %254 = vmatprep.subr.mxu0 0.0
    %255 = vmatpush1.msra.mxu0 0.0
    %256 = vmatprep.subr.mxu0 0.0
    %257 = vmatpush1.msra.mxu0 0.0
    %258 = vmatprep.subr.mxu0 0.0
    %259 = vmatpush1.msra.mxu0 0.0
    %260 = vmatprep.subr.mxu0 0.0
    %261 = vmatpush1.msra.mxu0 0.0
    %262 = vmatprep.subr.mxu0 0.0
    %263 = vmatpush1.msra.mxu0 0.0
    %264 = vmatprep.subr.mxu0 0.0
    %265 = vmatpush1.msra.mxu0 0.0
    %266 = vmatprep.subr.mxu0 0.0
    %267 = vmatpush1.msra.mxu0 0.0
    %268 = vmatprep.subr.mxu0 0.0
    %269 = vmatpush1.msra.mxu0 0.0
    %270 = vmatprep.subr.mxu0 0.0
    %271 = vmatpush1.msra.mxu0 0.0
    %272 = vmatprep.subr.mxu0 0.0
    %273 = vmatpush1.msra.mxu0 0.0
    %274 = vmatprep.subr.mxu0 0.0
    %275 = vmatpush1.msra.mxu0 0.0
    %276 = vmatprep.subr.mxu0 0.0
    %277 = vmatpush1.msra.mxu0 0.0
    %278 = vmatprep.subr.mxu0 0.0
    %279 = vmatpush1.msra.mxu0 0.0
    %280 = vmatprep.subr.mxu0 0.0
    %281 = vmatpush1.msra.mxu0 0.0
    %282 = vmatprep.subr.mxu0 0.0
    %283 = vmatpush1.msra.mxu0 0.0
    %284 = vmatprep.subr.mxu0 0.0
    %285 = vmatpush1.msra.mxu0 0.0
    %286 = vmatprep.subr.mxu0 0.0
    %287 = vmatpush1.msra.mxu0 0.0
    %288 = vmatprep.mubr.f32.mxu0 0.0
    %289 = vmatmul.mubr.f32.gmra.mrb[0].mxu0 %v222
    %v290 = vpop.f32.mrb[0].mxu0
    %v291 = vadd.f32 0.0, %v290
    %v292 = vpop.f32.mrb[0].mxu0
    %293 = vdwg.mxu0
    %v294 = vadd.f32 %v208, %v291
    %v295 = vxor.u32 %v294, 2147483648
    %v296 = vmul.f32 %v295, 1.442695
    %v297 = vpow.pop %v296
    %v298 = vadd.f32 %v297, 1.0
    %v299 = vrcp.pop %v298
    %v300 = vmul.f32 1.0, %v299
    %v301 = vtanh.pop %v294
    %v302 = vmul.f32 %v300, 0.0
    %304 = vrot.lane.b32.xlu0 %v301, 64
    %v305 = vpop.permute.xlu0 %304
    %v307 = vmul.f32 %v300, %v305
    %309 = vrot.lane.b32.xlu0 %v307, 32
    %v310 = vpop.permute.xlu0 %309
    %v312 = vadd.f32 %v302, %v310
    %v313 = vtanh.pop %v312
    %315 = vrot.lane.b32.xlu0 %v313, 64
    %v316 = vpop.permute.xlu0 %315
    %v318 = vmul.f32 %v300, %v316
    %320 = vrot.lane.b32.xlu0 %v318, 32
    %v321 = vpop.permute.xlu0 %320
    %v322 = vsel %vm220, %v321, 0
    %324 = vmatprep.subr.mxu0 0.0
    %325 = vmatpush1.msra.mxu0 %v216
    %326 = vmatprep.subr.mxu0 0.0
    %327 = vmatpush1.msra.mxu0 %v217
    %328 = vmatprep.subr.mxu0 0.0
    %329 = vmatpush1.msra.mxu0 %v218
    %330 = vmatprep.subr.mxu0 0.0
    %331 = vmatpush1.msra.mxu0 %v219
    %332 = vmatprep.subr.mxu0 0.0
    %333 = vmatpush1.msra.mxu0 0.0
    %334 = vmatprep.subr.mxu0 0.0
    %335 = vmatpush1.msra.mxu0 0.0
    %336 = vmatprep.subr.mxu0 0.0
    %337 = vmatpush1.msra.mxu0 0.0
    %338 = vmatprep.subr.mxu0 0.0
    %339 = vmatpush1.msra.mxu0 0.0
    %340 = vmatprep.subr.mxu0 0.0
    %341 = vmatpush1.msra.mxu0 0.0
    %342 = vmatprep.subr.mxu0 0.0
    %343 = vmatpush1.msra.mxu0 0.0
    %344 = vmatprep.subr.mxu0 0.0
    %345 = vmatpush1.msra.mxu0 0.0
    %346 = vmatprep.subr.mxu0 0.0
    %347 = vmatpush1.msra.mxu0 0.0
    %348 = vmatprep.subr.mxu0 0.0
    %349 = vmatpush1.msra.mxu0 0.0
    %350 = vmatprep.subr.mxu0 0.0
    %351 = vmatpush1.msra.mxu0 0.0
    %352 = vmatprep.subr.mxu0 0.0
    %353 = vmatpush1.msra.mxu0 0.0
    %354 = vmatprep.subr.mxu0 0.0
    %355 = vmatpush1.msra.mxu0 0.0
    %356 = vmatprep.subr.mxu0 0.0
    %357 = vmatpush1.msra.mxu0 0.0
    %358 = vmatprep.subr.mxu0 0.0
    %359 = vmatpush1.msra.mxu0 0.0
    %360 = vmatprep.subr.mxu0 0.0
    %361 = vmatpush1.msra.mxu0 0.0
    %362 = vmatprep.subr.mxu0 0.0
    %363 = vmatpush1.msra.mxu0 0.0
    %364 = vmatprep.subr.mxu0 0.0
    %365 = vmatpush1.msra.mxu0 0.0
    %366 = vmatprep.subr.mxu0 0.0
    %367 = vmatpush1.msra.mxu0 0.0
    %368 = vmatprep.subr.mxu0 0.0
    %369 = vmatpush1.msra.mxu0 0.0
    %370 = vmatprep.subr.mxu0 0.0
    %371 = vmatpush1.msra.mxu0 0.0
    %372 = vmatprep.subr.mxu0 0.0
    %373 = vmatpush1.msra.mxu0 0.0
    %374 = vmatprep.subr.mxu0 0.0
    %375 = vmatpush1.msra.mxu0 0.0
    %376 = vmatprep.subr.mxu0 0.0
    %377 = vmatpush1.msra.mxu0 0.0
    %378 = vmatprep.subr.mxu0 0.0
    %379 = vmatpush1.msra.mxu0 0.0
    %380 = vmatprep.subr.mxu0 0.0
    %381 = vmatpush1.msra.mxu0 0.0
    %382 = vmatprep.subr.mxu0 0.0
    %383 = vmatpush1.msra.mxu0 0.0
    %384 = vmatprep.subr.mxu0 0.0
    %385 = vmatpush1.msra.mxu0 0.0
    %386 = vmatprep.subr.mxu0 0.0
    %387 = vmatpush1.msra.mxu0 0.0
    %388 = vmatprep.mubr.f32.mxu0 0.0
    %389 = vmatmul.mubr.f32.gmra.mrb[0].mxu0 %v322
    %v390 = vpop.f32.mrb[0].mxu0
    %v391 = vadd.f32 0.0, %v390
    %v392 = vpop.f32.mrb[0].mxu0
    %393 = vdwg.mxu0
    %v395 = vrot.slane %v391, 6
    %v397 = vadd.f32 %v208, %v395
    %v398 = vxor.u32 %v397, 2147483648
    %v399 = vmul.f32 %v398, 1.442695
    %v400 = vpow.pop %v399
    %v401 = vadd.f32 %v400, 1.0
    %v402 = vrcp.pop %v401
    %v403 = vmul.f32 1.0, %v402
    %v404 = vtanh.pop %v397
    %v406 = vrot.slane %v312, 6
    %v408 = vmul.f32 %v403, %v406
    %410 = vrot.lane.b32.xlu0 %v404, 64
    %v411 = vpop.permute.xlu0 %410
    %v413 = vmul.f32 %v403, %v411
    %415 = vrot.lane.b32.xlu0 %v413, 32
    %v416 = vpop.permute.xlu0 %415
    %v418 = vadd.f32 %v408, %v416
    %v419 = vtanh.pop %v418
    %421 = vrot.lane.b32.xlu0 %v419, 64
    %v422 = vpop.permute.xlu0 %421
    %v424 = vmul.f32 %v403, %v422
    %v426 = vrot.slane %v424, 2
    %427 = vrot.lane.b32.xlu0 %v426, 32
    %v428 = vpop.permute.xlu0 %427
    %v429 = vsel %vm220, %v428, 0
    %431 = vmatprep.subr.mxu0 0.0
    %432 = vmatpush1.msra.mxu0 %v216
    %433 = vmatprep.subr.mxu0 0.0
    %434 = vmatpush1.msra.mxu0 %v217
    %435 = vmatprep.subr.mxu0 0.0
    %436 = vmatpush1.msra.mxu0 %v218
    %437 = vmatprep.subr.mxu0 0.0
    %438 = vmatpush1.msra.mxu0 %v219
    %439 = vmatprep.subr.mxu0 0.0
    %440 = vmatpush1.msra.mxu0 0.0
    %441 = vmatprep.subr.mxu0 0.0
    %442 = vmatpush1.msra.mxu0 0.0
    %443 = vmatprep.subr.mxu0 0.0
    %444 = vmatpush1.msra.mxu0 0.0
    %445 = vmatprep.subr.mxu0 0.0
    %446 = vmatpush1.msra.mxu0 0.0
    %447 = vmatprep.subr.mxu0 0.0
    %448 = vmatpush1.msra.mxu0 0.0
    %449 = vmatprep.subr.mxu0 0.0
    %450 = vmatpush1.msra.mxu0 0.0
    %451 = vmatprep.subr.mxu0 0.0
    %452 = vmatpush1.msra.mxu0 0.0
    %453 = vmatprep.subr.mxu0 0.0
    %454 = vmatpush1.msra.mxu0 0.0
    %455 = vmatprep.subr.mxu0 0.0
    %456 = vmatpush1.msra.mxu0 0.0
    %457 = vmatprep.subr.mxu0 0.0
    %458 = vmatpush1.msra.mxu0 0.0
    %459 = vmatprep.subr.mxu0 0.0
    %460 = vmatpush1.msra.mxu0 0.0
    %461 = vmatprep.subr.mxu0 0.0
    %462 = vmatpush1.msra.mxu0 0.0
    %463 = vmatprep.subr.mxu0 0.0
    %464 = vmatpush1.msra.mxu0 0.0
    %465 = vmatprep.subr.mxu0 0.0
    %466 = vmatpush1.msra.mxu0 0.0
    %467 = vmatprep.subr.mxu0 0.0
    %468 = vmatpush1.msra.mxu0 0.0
    %469 = vmatprep.subr.mxu0 0.0
    %470 = vmatpush1.msra.mxu0 0.0
    %471 = vmatprep.subr.mxu0 0.0
    %472 = vmatpush1.msra.mxu0 0.0
    %473 = vmatprep.subr.mxu0 0.0
    %474 = vmatpush1.msra.mxu0 0.0
    %475 = vmatprep.subr.mxu0 0.0
    %476 = vmatpush1.msra.mxu0 0.0
    %477 = vmatprep.subr.mxu0 0.0
    %478 = vmatpush1.msra.mxu0 0.0
    %479 = vmatprep.subr.mxu0 0.0
    %480 = vmatpush1.msra.mxu0 0.0
    %481 = vmatprep.subr.mxu0 0.0
    %482 = vmatpush1.msra.mxu0 0.0
    %483 = vmatprep.subr.mxu0 0.0
    %484 = vmatpush1.msra.mxu0 0.0
    %485 = vmatprep.subr.mxu0 0.0
    %486 = vmatpush1.msra.mxu0 0.0
    %487 = vmatprep.subr.mxu0 0.0
    %488 = vmatpush1.msra.mxu0 0.0
    %489 = vmatprep.subr.mxu0 0.0
    %490 = vmatpush1.msra.mxu0 0.0
    %491 = vmatprep.subr.mxu0 0.0
    %492 = vmatpush1.msra.mxu0 0.0
    %493 = vmatprep.subr.mxu0 0.0
    %494 = vmatpush1.msra.mxu0 0.0
    %495 = vmatprep.mubr.f32.mxu0 0.0
    %496 = vmatmul.mubr.f32.gmra.mrb[0].mxu0 %v429
    %v497 = vpop.f32.mrb[0].mxu0
    %v498 = vadd.f32 0.0, %v497
    %v499 = vpop.f32.mrb[0].mxu0
    %500 = vdwg.mxu0
    %v502 = vrot.slane %v498, 4
    %v504 = vadd.f32 %v208, %v502
    %v505 = vxor.u32 %v504, 2147483648
    %v506 = vmul.f32 %v505, 1.442695
    %v507 = vpow.pop %v506
    %v508 = vadd.f32 %v507, 1.0
    %v509 = vrcp.pop %v508
    %v510 = vmul.f32 1.0, %v509
    %v511 = vtanh.pop %v504
    %v513 = vrot.slane %v418, 6
    %v515 = vmul.f32 %v510, %v513
    %517 = vrot.lane.b32.xlu0 %v511, 64
    %v518 = vpop.permute.xlu0 %517
    %v520 = vmul.f32 %v510, %v518
    %522 = vrot.lane.b32.xlu0 %v520, 32
    %v523 = vpop.permute.xlu0 %522
    %v525 = vadd.f32 %v515, %v523
    %v526 = vtanh.pop %v525
    %528 = vrot.lane.b32.xlu0 %v526, 64
    %v529 = vpop.permute.xlu0 %528
    %v531 = vmul.f32 %v510, %v529
    %v533 = vrot.slane %v531, 4
    %534 = vrot.lane.b32.xlu0 %v533, 32
    %v535 = vpop.permute.xlu0 %534
    %v536 = vsel %vm220, %v535, 0
    %538 = vmatprep.subr.mxu0 0.0
    %539 = vmatpush1.msra.mxu0 %v216
    %540 = vmatprep.subr.mxu0 0.0
    %541 = vmatpush1.msra.mxu0 %v217
    %542 = vmatprep.subr.mxu0 0.0
    %543 = vmatpush1.msra.mxu0 %v218
    %544 = vmatprep.subr.mxu0 0.0
    %545 = vmatpush1.msra.mxu0 %v219
    %546 = vmatprep.subr.mxu0 0.0
    %547 = vmatpush1.msra.mxu0 0.0
    %548 = vmatprep.subr.mxu0 0.0
    %549 = vmatpush1.msra.mxu0 0.0
    %550 = vmatprep.subr.mxu0 0.0
    %551 = vmatpush1.msra.mxu0 0.0
    %552 = vmatprep.subr.mxu0 0.0
    %553 = vmatpush1.msra.mxu0 0.0
    %554 = vmatprep.subr.mxu0 0.0
    %555 = vmatpush1.msra.mxu0 0.0
    %556 = vmatprep.subr.mxu0 0.0
    %557 = vmatpush1.msra.mxu0 0.0
    %558 = vmatprep.subr.mxu0 0.0
    %559 = vmatpush1.msra.mxu0 0.0
    %560 = vmatprep.subr.mxu0 0.0
    %561 = vmatpush1.msra.mxu0 0.0
    %562 = vmatprep.subr.mxu0 0.0
    %563 = vmatpush1.msra.mxu0 0.0
    %564 = vmatprep.subr.mxu0 0.0
    %565 = vmatpush1.msra.mxu0 0.0
    %566 = vmatprep.subr.mxu0 0.0
    %567 = vmatpush1.msra.mxu0 0.0
    %568 = vmatprep.subr.mxu0 0.0
    %569 = vmatpush1.msra.mxu0 0.0
    %570 = vmatprep.subr.mxu0 0.0
    %571 = vmatpush1.msra.mxu0 0.0
    %572 = vmatprep.subr.mxu0 0.0
    %573 = vmatpush1.msra.mxu0 0.0
    %574 = vmatprep.subr.mxu0 0.0
    %575 = vmatpush1.msra.mxu0 0.0
    %576 = vmatprep.subr.mxu0 0.0
    %577 = vmatpush1.msra.mxu0 0.0
    %578 = vmatprep.subr.mxu0 0.0
    %579 = vmatpush1.msra.mxu0 0.0
    %580 = vmatprep.subr.mxu0 0.0
    %581 = vmatpush1.msra.mxu0 0.0
    %582 = vmatprep.subr.mxu0 0.0
    %583 = vmatpush1.msra.mxu0 0.0
    %584 = vmatprep.subr.mxu0 0.0
    %585 = vmatpush1.msra.mxu0 0.0
    %586 = vmatprep.subr.mxu0 0.0
    %587 = vmatpush1.msra.mxu0 0.0
    %588 = vmatprep.subr.mxu0 0.0
    %589 = vmatpush1.msra.mxu0 0.0
    %590 = vmatprep.subr.mxu0 0.0
    %591 = vmatpush1.msra.mxu0 0.0
    %592 = vmatprep.subr.mxu0 0.0
    %593 = vmatpush1.msra.mxu0 0.0
    %594 = vmatprep.subr.mxu0 0.0
    %595 = vmatpush1.msra.mxu0 0.0
    %596 = vmatprep.subr.mxu0 0.0
    %597 = vmatpush1.msra.mxu0 0.0
    %598 = vmatprep.subr.mxu0 0.0
    %599 = vmatpush1.msra.mxu0 0.0
    %600 = vmatprep.subr.mxu0 0.0
    %601 = vmatpush1.msra.mxu0 0.0
    %602 = vmatprep.mubr.f32.mxu0 0.0
    %603 = vmatmul.mubr.f32.gmra.mrb[0].mxu0 %v536
    %v604 = vpop.f32.mrb[0].mxu0
    %v605 = vadd.f32 0.0, %v604
    %v606 = vpop.f32.mrb[0].mxu0
    %607 = vdwg.mxu0
    %v609 = vrot.slane %v605, 2
    %v611 = vadd.f32 %v208, %v609
    %v612 = vxor.u32 %v611, 2147483648
    %v613 = vmul.f32 %v612, 1.442695
    %v614 = vpow.pop %v613
    %v615 = vadd.f32 %v614, 1.0
    %v616 = vrcp.pop %v615
    %v617 = vmul.f32 1.0, %v616
    %v618 = vtanh.pop %v611
    %v620 = vrot.slane %v525, 6
    %v622 = vmul.f32 %v617, %v620
    %624 = vrot.lane.b32.xlu0 %v618, 64
    %v625 = vpop.permute.xlu0 %624
    %v627 = vmul.f32 %v617, %v625
    %629 = vrot.lane.b32.xlu0 %v627, 32
    %v630 = vpop.permute.xlu0 %629
    %v632 = vadd.f32 %v622, %v630
    %v633 = vtanh.pop %v632
    %635 = vrot.lane.b32.xlu0 %v633, 64
    %v636 = vpop.permute.xlu0 %635
    %v638 = vmul.f32 %v617, %v636
    %v640 = vrot.slane %v638, 6
    %641 = vrot.lane.b32.xlu0 %v640, 32
    %v642 = vpop.permute.xlu0 %641
    %v643 = vsel %vm220, %v642, 0
    %645 = vmatprep.subr.mxu0 0.0
    %646 = vmatpush1.msra.mxu0 %v216
    %647 = vmatprep.subr.mxu0 0.0
    %648 = vmatpush1.msra.mxu0 %v217
    %649 = vmatprep.subr.mxu0 0.0
    %650 = vmatpush1.msra.mxu0 %v218
    %651 = vmatprep.subr.mxu0 0.0
    %652 = vmatpush1.msra.mxu0 %v219
    %653 = vmatprep.subr.mxu0 0.0
    %654 = vmatpush1.msra.mxu0 0.0
    %655 = vmatprep.subr.mxu0 0.0
    %656 = vmatpush1.msra.mxu0 0.0
    %657 = vmatprep.subr.mxu0 0.0
    %658 = vmatpush1.msra.mxu0 0.0
    %659 = vmatprep.subr.mxu0 0.0
    %660 = vmatpush1.msra.mxu0 0.0
    %661 = vmatprep.subr.mxu0 0.0
    %662 = vmatpush1.msra.mxu0 0.0
    %663 = vmatprep.subr.mxu0 0.0
    %664 = vmatpush1.msra.mxu0 0.0
    %665 = vmatprep.subr.mxu0 0.0
    %666 = vmatpush1.msra.mxu0 0.0
    %667 = vmatprep.subr.mxu0 0.0
    %668 = vmatpush1.msra.mxu0 0.0
    %669 = vmatprep.subr.mxu0 0.0
    %670 = vmatpush1.msra.mxu0 0.0
    %671 = vmatprep.subr.mxu0 0.0
    %672 = vmatpush1.msra.mxu0 0.0
    %673 = vmatprep.subr.mxu0 0.0
    %674 = vmatpush1.msra.mxu0 0.0
    %675 = vmatprep.subr.mxu0 0.0
    %676 = vmatpush1.msra.mxu0 0.0
    %677 = vmatprep.subr.mxu0 0.0
    %678 = vmatpush1.msra.mxu0 0.0
    %679 = vmatprep.subr.mxu0 0.0
    %680 = vmatpush1.msra.mxu0 0.0
    %681 = vmatprep.subr.mxu0 0.0
    %682 = vmatpush1.msra.mxu0 0.0
    %683 = vmatprep.subr.mxu0 0.0
    %684 = vmatpush1.msra.mxu0 0.0
    %685 = vmatprep.subr.mxu0 0.0
    %686 = vmatpush1.msra.mxu0 0.0
    %687 = vmatprep.subr.mxu0 0.0
    %688 = vmatpush1.msra.mxu0 0.0
    %689 = vmatprep.subr.mxu0 0.0
    %690 = vmatpush1.msra.mxu0 0.0
    %691 = vmatprep.subr.mxu0 0.0
    %692 = vmatpush1.msra.mxu0 0.0
    %693 = vmatprep.subr.mxu0 0.0
    %694 = vmatpush1.msra.mxu0 0.0
    %695 = vmatprep.subr.mxu0 0.0
    %696 = vmatpush1.msra.mxu0 0.0
    %697 = vmatprep.subr.mxu0 0.0
    %698 = vmatpush1.msra.mxu0 0.0
    %699 = vmatprep.subr.mxu0 0.0
    %700 = vmatpush1.msra.mxu0 0.0
    %701 = vmatprep.subr.mxu0 0.0
    %702 = vmatpush1.msra.mxu0 0.0
    %703 = vmatprep.subr.mxu0 0.0
    %704 = vmatpush1.msra.mxu0 0.0
    %705 = vmatprep.subr.mxu0 0.0
    %706 = vmatpush1.msra.mxu0 0.0
    %707 = vmatprep.subr.mxu0 0.0
    %708 = vmatpush1.msra.mxu0 0.0
    %709 = vmatprep.mubr.f32.mxu0 0.0
    %710 = vmatmul.mubr.f32.gmra.mrb[0].mxu0 %v643
    %v711 = vpop.f32.mrb[0].mxu0
    %v712 = vadd.f32 0.0, %v711
    %v713 = vpop.f32.mrb[0].mxu0
    %714 = vdwg.mxu0
    %v715 = vadd.f32 %v213, %v712
    %v716 = vxor.u32 %v715, 2147483648
    %v717 = vmul.f32 %v716, 1.442695
    %v718 = vpow.pop %v717
    %v719 = vadd.f32 %v718, 1.0
    %v720 = vrcp.pop %v719
    %v721 = vmul.f32 1.0, %v720
    %v722 = vtanh.pop %v715
    %v724 = vrot.slane %v632, 6
    %v726 = vmul.f32 %v721, %v724
    %728 = vrot.lane.b32.xlu0 %v722, 64
    %v729 = vpop.permute.xlu0 %728
    %v731 = vmul.f32 %v721, %v729
    %733 = vrot.lane.b32.xlu0 %v731, 32
    %v734 = vpop.permute.xlu0 %733
    %v736 = vadd.f32 %v726, %v734
    %v737 = vtanh.pop %v736
    %739 = vrot.lane.b32.xlu0 %v737, 64
    %v740 = vpop.permute.xlu0 %739
    %v742 = vmul.f32 %v721, %v740
    %744 = vrot.lane.b32.xlu0 %v742, 32
    %v745 = vpop.permute.xlu0 %744
    %v746 = vsel %vm220, %v745, 0
    %748 = vmatprep.subr.mxu0 0.0
    %749 = vmatpush1.msra.mxu0 %v216
    %750 = vmatprep.subr.mxu0 0.0
    %751 = vmatpush1.msra.mxu0 %v217
    %752 = vmatprep.subr.mxu0 0.0
    %753 = vmatpush1.msra.mxu0 %v218
    %754 = vmatprep.subr.mxu0 0.0
    %755 = vmatpush1.msra.mxu0 %v219
    %756 = vmatprep.subr.mxu0 0.0
    %757 = vmatpush1.msra.mxu0 0.0
    %758 = vmatprep.subr.mxu0 0.0
    %759 = vmatpush1.msra.mxu0 0.0
    %760 = vmatprep.subr.mxu0 0.0
    %761 = vmatpush1.msra.mxu0 0.0
    %762 = vmatprep.subr.mxu0 0.0
    %763 = vmatpush1.msra.mxu0 0.0
    %764 = vmatprep.subr.mxu0 0.0
    %765 = vmatpush1.msra.mxu0 0.0
    %766 = vmatprep.subr.mxu0 0.0
    %767 = vmatpush1.msra.mxu0 0.0
    %768 = vmatprep.subr.mxu0 0.0
    %769 = vmatpush1.msra.mxu0 0.0
    %770 = vmatprep.subr.mxu0 0.0
    %771 = vmatpush1.msra.mxu0 0.0
    %772 = vmatprep.subr.mxu0 0.0
    %773 = vmatpush1.msra.mxu0 0.0
    %774 = vmatprep.subr.mxu0 0.0
    %775 = vmatpush1.msra.mxu0 0.0
    %776 = vmatprep.subr.mxu0 0.0
    %777 = vmatpush1.msra.mxu0 0.0
    %778 = vmatprep.subr.mxu0 0.0
    %779 = vmatpush1.msra.mxu0 0.0
    %780 = vmatprep.subr.mxu0 0.0
    %781 = vmatpush1.msra.mxu0 0.0
    %782 = vmatprep.subr.mxu0 0.0
    %783 = vmatpush1.msra.mxu0 0.0
    %784 = vmatprep.subr.mxu0 0.0
    %785 = vmatpush1.msra.mxu0 0.0
    %786 = vmatprep.subr.mxu0 0.0
    %787 = vmatpush1.msra.mxu0 0.0
    %788 = vmatprep.subr.mxu0 0.0
    %789 = vmatpush1.msra.mxu0 0.0
    %790 = vmatprep.subr.mxu0 0.0
    %791 = vmatpush1.msra.mxu0 0.0
    %792 = vmatprep.subr.mxu0 0.0
    %793 = vmatpush1.msra.mxu0 0.0
    %794 = vmatprep.subr.mxu0 0.0
    %795 = vmatpush1.msra.mxu0 0.0
    %796 = vmatprep.subr.mxu0 0.0
    %797 = vmatpush1.msra.mxu0 0.0
    %798 = vmatprep.subr.mxu0 0.0
    %799 = vmatpush1.msra.mxu0 0.0
    %800 = vmatprep.subr.mxu0 0.0
    %801 = vmatpush1.msra.mxu0 0.0
    %802 = vmatprep.subr.mxu0 0.0
    %803 = vmatpush1.msra.mxu0 0.0
    %804 = vmatprep.subr.mxu0 0.0
    %805 = vmatpush1.msra.mxu0 0.0
    %806 = vmatprep.subr.mxu0 0.0
    %807 = vmatpush1.msra.mxu0 0.0
    %808 = vmatprep.subr.mxu0 0.0
    %809 = vmatpush1.msra.mxu0 0.0
    %810 = vmatprep.subr.mxu0 0.0
    %811 = vmatpush1.msra.mxu0 0.0
    %812 = vmatprep.mubr.f32.mxu0 0.0
    %813 = vmatmul.mubr.f32.gmra.mrb[0].mxu0 %v746
    %v814 = vpop.f32.mrb[0].mxu0
    %v815 = vadd.f32 0.0, %v814
    %v816 = vpop.f32.mrb[0].mxu0
    %817 = vdwg.mxu0
    %v819 = vrot.slane %v815, 6
    %v821 = vadd.f32 %v213, %v819
    %v822 = vxor.u32 %v821, 2147483648
    %v823 = vmul.f32 %v822, 1.442695
    %v824 = vpow.pop %v823
    %v825 = vadd.f32 %v824, 1.0
    %v826 = vrcp.pop %v825
    %v827 = vmul.f32 1.0, %v826
    %v828 = vtanh.pop %v821
    %v830 = vrot.slane %v736, 6
    %v832 = vmul.f32 %v827, %v830
    %834 = vrot.lane.b32.xlu0 %v828, 64
    %v835 = vpop.permute.xlu0 %834
    %v837 = vmul.f32 %v827, %v835
    %839 = vrot.lane.b32.xlu0 %v837, 32
    %v840 = vpop.permute.xlu0 %839
    %v842 = vadd.f32 %v832, %v840
    %v843 = vtanh.pop %v842
    %845 = vrot.lane.b32.xlu0 %v843, 64
    %v846 = vpop.permute.xlu0 %845
    %v848 = vmul.f32 %v827, %v846
    %v850 = vrot.slane %v848, 2
    %851 = vrot.lane.b32.xlu0 %v850, 32
    %v852 = vpop.permute.xlu0 %851
    %v853 = vsel %vm220, %v852, 0
    %855 = vmatprep.subr.mxu0 0.0
    %856 = vmatpush1.msra.mxu0 %v216
    %857 = vmatprep.subr.mxu0 0.0
    %858 = vmatpush1.msra.mxu0 %v217
    %859 = vmatprep.subr.mxu0 0.0
    %860 = vmatpush1.msra.mxu0 %v218
    %861 = vmatprep.subr.mxu0 0.0
    %862 = vmatpush1.msra.mxu0 %v219
    %863 = vmatprep.subr.mxu0 0.0
    %864 = vmatpush1.msra.mxu0 0.0
    %865 = vmatprep.subr.mxu0 0.0
    %866 = vmatpush1.msra.mxu0 0.0
    %867 = vmatprep.subr.mxu0 0.0
    %868 = vmatpush1.msra.mxu0 0.0
    %869 = vmatprep.subr.mxu0 0.0
    %870 = vmatpush1.msra.mxu0 0.0
    %871 = vmatprep.subr.mxu0 0.0
    %872 = vmatpush1.msra.mxu0 0.0
    %873 = vmatprep.subr.mxu0 0.0
    %874 = vmatpush1.msra.mxu0 0.0
    %875 = vmatprep.subr.mxu0 0.0
    %876 = vmatpush1.msra.mxu0 0.0
    %877 = vmatprep.subr.mxu0 0.0
    %878 = vmatpush1.msra.mxu0 0.0
    %879 = vmatprep.subr.mxu0 0.0
    %880 = vmatpush1.msra.mxu0 0.0
    %881 = vmatprep.subr.mxu0 0.0
    %882 = vmatpush1.msra.mxu0 0.0
    %883 = vmatprep.subr.mxu0 0.0
    %884 = vmatpush1.msra.mxu0 0.0
    %885 = vmatprep.subr.mxu0 0.0
    %886 = vmatpush1.msra.mxu0 0.0
    %887 = vmatprep.subr.mxu0 0.0
    %888 = vmatpush1.msra.mxu0 0.0
    %889 = vmatprep.subr.mxu0 0.0
    %890 = vmatpush1.msra.mxu0 0.0
    %891 = vmatprep.subr.mxu0 0.0
    %892 = vmatpush1.msra.mxu0 0.0
    %893 = vmatprep.subr.mxu0 0.0
    %894 = vmatpush1.msra.mxu0 0.0
    %895 = vmatprep.subr.mxu0 0.0
    %896 = vmatpush1.msra.mxu0 0.0
    %897 = vmatprep.subr.mxu0 0.0
    %898 = vmatpush1.msra.mxu0 0.0
    %899 = vmatprep.subr.mxu0 0.0
    %900 = vmatpush1.msra.mxu0 0.0
    %901 = vmatprep.subr.mxu0 0.0
    %902 = vmatpush1.msra.mxu0 0.0
    %903 = vmatprep.subr.mxu0 0.0
    %904 = vmatpush1.msra.mxu0 0.0
    %905 = vmatprep.subr.mxu0 0.0
    %906 = vmatpush1.msra.mxu0 0.0
    %907 = vmatprep.subr.mxu0 0.0
    %908 = vmatpush1.msra.mxu0 0.0
    %909 = vmatprep.subr.mxu0 0.0
    %910 = vmatpush1.msra.mxu0 0.0
    %911 = vmatprep.subr.mxu0 0.0
    %912 = vmatpush1.msra.mxu0 0.0
    %913 = vmatprep.subr.mxu0 0.0
    %914 = vmatpush1.msra.mxu0 0.0
    %915 = vmatprep.subr.mxu0 0.0
    %916 = vmatpush1.msra.mxu0 0.0
    %917 = vmatprep.subr.mxu0 0.0
    %918 = vmatpush1.msra.mxu0 0.0
    %919 = vmatprep.mubr.f32.mxu0 0.0
    %920 = vmatmul.mubr.f32.gmra.mrb[0].mxu0 %v853
    %v921 = vpop.f32.mrb[0].mxu0
    %v922 = vadd.f32 0.0, %v921
    %v923 = vpop.f32.mrb[0].mxu0
    %924 = vdwg.mxu0
    %v926 = vrot.slane %v922, 4
    %v928 = vadd.f32 %v213, %v926
    %v929 = vxor.u32 %v928, 2147483648
    %v930 = vmul.f32 %v929, 1.442695
    %v931 = vpow.pop %v930
    %v932 = vadd.f32 %v931, 1.0
    %v933 = vrcp.pop %v932
    %v934 = vmul.f32 1.0, %v933
    %v935 = vtanh.pop %v928
    %v937 = vrot.slane %v842, 6
    %v939 = vmul.f32 %v934, %v937
    %941 = vrot.lane.b32.xlu0 %v935, 64
    %v942 = vpop.permute.xlu0 %941
    %v944 = vmul.f32 %v934, %v942
    %946 = vrot.lane.b32.xlu0 %v944, 32
    %v947 = vpop.permute.xlu0 %946
    %v949 = vadd.f32 %v939, %v947
    %v950 = vtanh.pop %v949
    %952 = vrot.lane.b32.xlu0 %v950, 64
    %v953 = vpop.permute.xlu0 %952
    %v955 = vmul.f32 %v934, %v953
    %v957 = vrot.slane %v955, 4
    %958 = vrot.lane.b32.xlu0 %v957, 32
    %v959 = vpop.permute.xlu0 %958
    %v960 = vsel %vm220, %v959, 0
    %962 = vmatprep.subr.mxu0 0.0
    %963 = vmatpush1.msra.mxu0 %v216
    %964 = vmatprep.subr.mxu0 0.0
    %965 = vmatpush1.msra.mxu0 %v217
    %966 = vmatprep.subr.mxu0 0.0
    %967 = vmatpush1.msra.mxu0 %v218
    %968 = vmatprep.subr.mxu0 0.0
    %969 = vmatpush1.msra.mxu0 %v219
    %970 = vmatprep.subr.mxu0 0.0
    %971 = vmatpush1.msra.mxu0 0.0
    %972 = vmatprep.subr.mxu0 0.0
    %973 = vmatpush1.msra.mxu0 0.0
    %974 = vmatprep.subr.mxu0 0.0
    %975 = vmatpush1.msra.mxu0 0.0
    %976 = vmatprep.subr.mxu0 0.0
    %977 = vmatpush1.msra.mxu0 0.0
    %978 = vmatprep.subr.mxu0 0.0
    %979 = vmatpush1.msra.mxu0 0.0
    %980 = vmatprep.subr.mxu0 0.0
    %981 = vmatpush1.msra.mxu0 0.0
    %982 = vmatprep.subr.mxu0 0.0
    %983 = vmatpush1.msra.mxu0 0.0
    %984 = vmatprep.subr.mxu0 0.0
    %985 = vmatpush1.msra.mxu0 0.0
    %986 = vmatprep.subr.mxu0 0.0
    %987 = vmatpush1.msra.mxu0 0.0
    %988 = vmatprep.subr.mxu0 0.0
    %989 = vmatpush1.msra.mxu0 0.0
    %990 = vmatprep.subr.mxu0 0.0
    %991 = vmatpush1.msra.mxu0 0.0
    %992 = vmatprep.subr.mxu0 0.0
    %993 = vmatpush1.msra.mxu0 0.0
    %994 = vmatprep.subr.mxu0 0.0
    %995 = vmatpush1.msra.mxu0 0.0
    %996 = vmatprep.subr.mxu0 0.0
    %997 = vmatpush1.msra.mxu0 0.0
    %998 = vmatprep.subr.mxu0 0.0
    %999 = vmatpush1.msra.mxu0 0.0
    %1000 = vmatprep.subr.mxu0 0.0
    %1001 = vmatpush1.msra.mxu0 0.0
    %1002 = vmatprep.subr.mxu0 0.0
    %1003 = vmatpush1.msra.mxu0 0.0
    %1004 = vmatprep.subr.mxu0 0.0
    %1005 = vmatpush1.msra.mxu0 0.0
    %1006 = vmatprep.subr.mxu0 0.0
    %1007 = vmatpush1.msra.mxu0 0.0
    %1008 = vmatprep.subr.mxu0 0.0
    %1009 = vmatpush1.msra.mxu0 0.0
    %1010 = vmatprep.subr.mxu0 0.0
    %1011 = vmatpush1.msra.mxu0 0.0
    %1012 = vmatprep.subr.mxu0 0.0
    %1013 = vmatpush1.msra.mxu0 0.0
    %1014 = vmatprep.subr.mxu0 0.0
    %1015 = vmatpush1.msra.mxu0 0.0
    %1016 = vmatprep.subr.mxu0 0.0
    %1017 = vmatpush1.msra.mxu0 0.0
    %1018 = vmatprep.subr.mxu0 0.0
    %1019 = vmatpush1.msra.mxu0 0.0
    %1020 = vmatprep.subr.mxu0 0.0
    %1021 = vmatpush1.msra.mxu0 0.0
    %1022 = vmatprep.subr.mxu0 0.0
    %1023 = vmatpush1.msra.mxu0 0.0
    %1024 = vmatprep.subr.mxu0 0.0
    %1025 = vmatpush1.msra.mxu0 0.0
    %1026 = vmatprep.mubr.f32.mxu0 0.0
    %1027 = vmatmul.mubr.f32.gmra.mrb[0].mxu0 %v960
    %v1028 = vpop.f32.mrb[0].mxu0
    %v1029 = vadd.f32 0.0, %v1028
    %v1030 = vpop.f32.mrb[0].mxu0
    %1031 = vdwg.mxu0
    %v1033 = vrot.slane %v1029, 2
    %v1035 = vadd.f32 %v213, %v1033
    %v1036 = vxor.u32 %v1035, 2147483648
    %v1037 = vmul.f32 %v1036, 1.442695
    %v1038 = vpow.pop %v1037
    %v1039 = vadd.f32 %v1038, 1.0
    %v1040 = vrcp.pop %v1039
    %v1041 = vmul.f32 1.0, %v1040
    %v1042 = vtanh.pop %v1035
    %v1044 = vrot.slane %v949, 6
    %v1046 = vmul.f32 %v1041, %v1044
    %1048 = vrot.lane.b32.xlu0 %v1042, 64
    %v1049 = vpop.permute.xlu0 %1048
    %v1051 = vmul.f32 %v1041, %v1049
    %1053 = vrot.lane.b32.xlu0 %v1051, 32
    %v1054 = vpop.permute.xlu0 %1053
    %v1056 = vadd.f32 %v1046, %v1054
    %v1057 = vtanh.pop %v1056
    %1059 = vrot.lane.b32.xlu0 %v1057, 64
    %v1060 = vpop.permute.xlu0 %1059
    %v1062 = vmul.f32 %v1041, %v1060
    %v1063 = vld [vmem:[#allocation11] sm:$0xff]
    %v1064 = vld [vmem:[#allocation11 + $0x8] sm:$0xff]
    %v1065 = vld [vmem:[#allocation11 + $0x10] sm:$0xff]
    %v1066 = vld [vmem:[#allocation11 + $0x18] sm:$0xff]
    %v1067 = vld [vmem:[#allocation12] sm:$0x1]
    %v1069 = vlaneseq
    %v1070 = vshrl.u32 %v1069, 7
    %v1071 = vsub.s32 0, %v1070
    %v1072 = vrot.slane %v1067, %v1071
    %v1075 = vrot.slane %v1062, 6
    %1076 = vrot.lane.b32.xlu0 %v1075, 32
    %v1077 = vpop.permute.xlu0 %1076
    %v1078 = vsel %vm220, %v1077, 0
    %1080 = vmatprep.subr.mxu0 0.0
    %1081 = vmatpush1.msra.mxu0 %v1063
    %1082 = vmatprep.subr.mxu0 0.0
    %1083 = vmatpush1.msra.mxu0 %v1064
    %1084 = vmatprep.subr.mxu0 0.0
    %1085 = vmatpush1.msra.mxu0 %v1065
    %1086 = vmatprep.subr.mxu0 0.0
    %1087 = vmatpush1.msra.mxu0 %v1066
    %1088 = vmatprep.subr.mxu0 0.0
    %1089 = vmatpush1.msra.mxu0 0.0
    %1090 = vmatprep.subr.mxu0 0.0
    %1091 = vmatpush1.msra.mxu0 0.0
    %1092 = vmatprep.subr.mxu0 0.0
    %1093 = vmatpush1.msra.mxu0 0.0
    %1094 = vmatprep.subr.mxu0 0.0
    %1095 = vmatpush1.msra.mxu0 0.0
    %1096 = vmatprep.subr.mxu0 0.0
    %1097 = vmatpush1.msra.mxu0 0.0
    %1098 = vmatprep.subr.mxu0 0.0
    %1099 = vmatpush1.msra.mxu0 0.0
    %1100 = vmatprep.subr.mxu0 0.0
    %1101 = vmatpush1.msra.mxu0 0.0
    %1102 = vmatprep.subr.mxu0 0.0
    %1103 = vmatpush1.msra.mxu0 0.0
    %1104 = vmatprep.subr.mxu0 0.0
    %1105 = vmatpush1.msra.mxu0 0.0
    %1106 = vmatprep.subr.mxu0 0.0
    %1107 = vmatpush1.msra.mxu0 0.0
    %1108 = vmatprep.subr.mxu0 0.0
    %1109 = vmatpush1.msra.mxu0 0.0
    %1110 = vmatprep.subr.mxu0 0.0
    %1111 = vmatpush1.msra.mxu0 0.0
    %1112 = vmatprep.subr.mxu0 0.0
    %1113 = vmatpush1.msra.mxu0 0.0
    %1114 = vmatprep.subr.mxu0 0.0
    %1115 = vmatpush1.msra.mxu0 0.0
    %1116 = vmatprep.subr.mxu0 0.0
    %1117 = vmatpush1.msra.mxu0 0.0
    %1118 = vmatprep.subr.mxu0 0.0
    %1119 = vmatpush1.msra.mxu0 0.0
    %1120 = vmatprep.subr.mxu0 0.0
    %1121 = vmatpush1.msra.mxu0 0.0
    %1122 = vmatprep.subr.mxu0 0.0
    %1123 = vmatpush1.msra.mxu0 0.0
    %1124 = vmatprep.subr.mxu0 0.0
    %1125 = vmatpush1.msra.mxu0 0.0
    %1126 = vmatprep.subr.mxu0 0.0
    %1127 = vmatpush1.msra.mxu0 0.0
    %1128 = vmatprep.subr.mxu0 0.0
    %1129 = vmatpush1.msra.mxu0 0.0
    %1130 = vmatprep.subr.mxu0 0.0
    %1131 = vmatpush1.msra.mxu0 0.0
    %1132 = vmatprep.subr.mxu0 0.0
    %1133 = vmatpush1.msra.mxu0 0.0
    %1134 = vmatprep.subr.mxu0 0.0
    %1135 = vmatpush1.msra.mxu0 0.0
    %1136 = vmatprep.subr.mxu0 0.0
    %1137 = vmatpush1.msra.mxu0 0.0
    %1138 = vmatprep.subr.mxu0 0.0
    %1139 = vmatpush1.msra.mxu0 0.0
    %1140 = vmatprep.subr.mxu0 0.0
    %1141 = vmatpush1.msra.mxu0 0.0
    %1142 = vmatprep.subr.mxu0 0.0
    %1143 = vmatpush1.msra.mxu0 0.0
    %1144 = vmatprep.mubr.f32.mxu0 0.0
    %1145 = vmatmul.mubr.f32.gmra.mrb[0].mxu0 %v1078
    %v1146 = vpop.f32.mrb[0].mxu0
    %v1147 = vadd.f32 %v1072, %v1146
    %v1148 = vpop.f32.mrb[0].mxu0
    %1149 = vdwg.mxu0
    %v1150 = vmax.f32 %v1147, 0.0
    %v1151 = vld [vmem:[#allocation14] sm:$0xff]
    %v1152 = vld [vmem:[#allocation14 + $0x8] sm:$0xff]
    %v1153 = vld [vmem:[#allocation14 + $0x10] sm:$0xff]
    %v1154 = vld [vmem:[#allocation14 + $0x18] sm:$0xff]
    %v1155 = vld [vmem:[#allocation2] sm:$0x1]
    %v1157 = vlaneseq
    %v1158 = vshrl.u32 %v1157, 7
    %v1159 = vsub.s32 0, %v1158
    %v1160 = vrot.slane %v1155, %v1159
    %v1163 = vsel %vm220, %v1150, 0
    %1165 = vmatprep.subr.mxu0 0.0
    %1166 = vmatpush1.msra.mxu0 %v1151
    %1167 = vmatprep.subr.mxu0 0.0
    %1168 = vmatpush1.msra.mxu0 %v1152
    %1169 = vmatprep.subr.mxu0 0.0
    %1170 = vmatpush1.msra.mxu0 %v1153
    %1171 = vmatprep.subr.mxu0 0.0
    %1172 = vmatpush1.msra.mxu0 %v1154
    %1173 = vmatprep.subr.mxu0 0.0
    %1174 = vmatpush1.msra.mxu0 0.0
    %1175 = vmatprep.subr.mxu0 0.0
    %1176 = vmatpush1.msra.mxu0 0.0
    %1177 = vmatprep.subr.mxu0 0.0
    %1178 = vmatpush1.msra.mxu0 0.0
    %1179 = vmatprep.subr.mxu0 0.0
    %1180 = vmatpush1.msra.mxu0 0.0
    %1181 = vmatprep.subr.mxu0 0.0
    %1182 = vmatpush1.msra.mxu0 0.0
    %1183 = vmatprep.subr.mxu0 0.0
    %1184 = vmatpush1.msra.mxu0 0.0
    %1185 = vmatprep.subr.mxu0 0.0
    %1186 = vmatpush1.msra.mxu0 0.0
    %1187 = vmatprep.subr.mxu0 0.0
    %1188 = vmatpush1.msra.mxu0 0.0
    %1189 = vmatprep.subr.mxu0 0.0
    %1190 = vmatpush1.msra.mxu0 0.0
    %1191 = vmatprep.subr.mxu0 0.0
    %1192 = vmatpush1.msra.mxu0 0.0
    %1193 = vmatprep.subr.mxu0 0.0
    %1194 = vmatpush1.msra.mxu0 0.0
    %1195 = vmatprep.subr.mxu0 0.0
    %1196 = vmatpush1.msra.mxu0 0.0
    %1197 = vmatprep.subr.mxu0 0.0
    %1198 = vmatpush1.msra.mxu0 0.0
    %1199 = vmatprep.subr.mxu0 0.0
    %1200 = vmatpush1.msra.mxu0 0.0
    %1201 = vmatprep.subr.mxu0 0.0
    %1202 = vmatpush1.msra.mxu0 0.0
    %1203 = vmatprep.subr.mxu0 0.0
    %1204 = vmatpush1.msra.mxu0 0.0
    %1205 = vmatprep.subr.mxu0 0.0
    %1206 = vmatpush1.msra.mxu0 0.0
    %1207 = vmatprep.subr.mxu0 0.0
    %1208 = vmatpush1.msra.mxu0 0.0
    %1209 = vmatprep.subr.mxu0 0.0
    %1210 = vmatpush1.msra.mxu0 0.0
    %1211 = vmatprep.subr.mxu0 0.0
    %1212 = vmatpush1.msra.mxu0 0.0
    %1213 = vmatprep.subr.mxu0 0.0
    %1214 = vmatpush1.msra.mxu0 0.0
    %1215 = vmatprep.subr.mxu0 0.0
    %1216 = vmatpush1.msra.mxu0 0.0
    %1217 = vmatprep.subr.mxu0 0.0
    %1218 = vmatpush1.msra.mxu0 0.0
    %1219 = vmatprep.subr.mxu0 0.0
    %1220 = vmatpush1.msra.mxu0 0.0
    %1221 = vmatprep.subr.mxu0 0.0
    %1222 = vmatpush1.msra.mxu0 0.0
    %1223 = vmatprep.subr.mxu0 0.0
    %1224 = vmatpush1.msra.mxu0 0.0
    %1225 = vmatprep.subr.mxu0 0.0
    %1226 = vmatpush1.msra.mxu0 0.0
    %1227 = vmatprep.subr.mxu0 0.0
    %1228 = vmatpush1.msra.mxu0 0.0
    %1229 = vmatprep.mubr.f32.mxu0 0.0
    %1230 = vmatmul.mubr.f32.gmra.mrb[0].mxu0 %v1163
    %v1231 = vpop.f32.mrb[0].mxu0
    %v1232 = vadd.f32 %v1160, %v1231
    %v1233 = vpop.f32.mrb[0].mxu0
    %1234 = vdwg.mxu0
    %vm1235 = vcmask 1024
    %1236 = vst.msk [vmem:[#allocation15] sm:$0x3] %vm1235, %v1232
    // Predicated region
    $region62: #{tpu_custom_call.1} parent=1 // pred_check
      _
    $region63: #{tpu_custom_call.1} parent=1 // pred_check_branch
      %1238 = sbr.rel (0) target = $region65
    $region64: #{tpu_custom_call.1} parent=1 // pred_region
      %s1240 = ssub.s32 32, 32
      %1241 = vsyncadd [#allocation5], %s1240
      %s1243 = sshll.u32 [#allocation15], 4
      %s1244 = int_to_ptr.vmem [resolvable:$true] %s1243
      %1246 = dma.vmem_to_hbm [thread:$0]  %s1244, 32, %s8, [#allocation5]
    $region65: #{tpu_custom_call.1} parent=1 // pred_fallthru
      _
    // Predicated region
    $region66: #{tpu_custom_call.1} parent=1 // pred_check
      _
    $region67: #{tpu_custom_call.1} parent=1 // pred_check_branch
      %1248 = sbr.rel (0) target = $region69
    $region68: #{tpu_custom_call.1} parent=1 // pred_region
      %1249 = dma.done [#allocation5], 32
    $region69: #{tpu_custom_call.1} parent=1 // pred_fallthru
      _
    %1250 = vsyncpa [#allocation4], 1
    %1251 = vsyncpa [#allocation7], 1
    %1252 = vsyncpa [#allocation10], 1
    %1253 = vsyncpa [#allocation13], 1
    %1254 = vsyncpa [#allocation5], 1

</llo_original>
